<compile_context>
chip_gen: v7x
topology: tpu7x:2x2x1
jax: 0.10.0
libtpu: 0.0.40
codegen_flags: <defaults>
</compile_context>

<pallas_src>
import functools

import jax
import jax.numpy as jnp
from jax.experimental import pallas as pl
from jax.experimental.pallas import tpu as pltpu

DIN = 3  # space_dim + 1  (t, x, y)


def dfnn_kernel(x_ref, w1c_ref, b1_ref, whbig_ref, bh_ref, wsel_ref,
                o_ref, cat_ref):
    """One batch tile, transposed layout (features on sublanes, batch on lanes).

    The primal activation and the 3 forward-mode tangent streams live in the
    persistent bf16 scratch `cat_ref` of shape (4H, TB); each hidden layer is
    one block-diagonal bf16 MXU matmul, the divergence is one folded matmul.
    All tanh / tanh' / tangent elementwise math is f32.
    """
    hdim = b1_ref.shape[0]

    x = x_ref[...]                                   # (3, TB) f32
    w10 = w1c_ref[0]                                 # (H, 1) = W1[:, 0]
    w11 = w1c_ref[1]                                 # (H, 1) = W1[:, 1]
    w12 = w1c_ref[2]                                 # (H, 1) = W1[:, 2]

    # --- first layer on the VPU (a K=3 contraction would waste MXU depth) ---
    z = (w10 * x[0:1, :] + w11 * x[1:2, :] + w12 * x[2:3, :]
         + b1_ref[...])                              # (H, TB) f32
    h = jnp.tanh(z)
    s = 1.0 - h * h                                  # tanh'(z)

    # primal + tangent inits T_k = tanh'(z) * W1[:, k], each block stored once
    # straight into the persistent matmul operand (no concatenates).
    cat_ref[:hdim, :] = h.astype(cat_ref.dtype)
    cat_ref[hdim:2 * hdim, :] = (s * w10).astype(cat_ref.dtype)
    cat_ref[2 * hdim:3 * hdim, :] = (s * w11).astype(cat_ref.dtype)
    cat_ref[3 * hdim:, :] = (s * w12).astype(cat_ref.dtype)

    # --- hidden layers: one blockdiag(W_l x4) bf16 matmul carries all 4 ------
    num_hidden = whbig_ref.shape[0]
    for l in range(num_hidden):
        zall = jnp.dot(whbig_ref[l], cat_ref[...],
                       preferred_element_type=jnp.float32)       # (4H, TB) f32
        hl = jnp.tanh(zall[:hdim] + bh_ref[l])                   # (H, TB) f32
        sl = 1.0 - hl * hl
        cat_ref[:hdim, :] = hl.astype(cat_ref.dtype)
        cat_ref[hdim:2 * hdim, :] = (sl * zall[hdim:2 * hdim]).astype(cat_ref.dtype)
        cat_ref[2 * hdim:3 * hdim, :] = (sl * zall[2 * hdim:3 * hdim]).astype(cat_ref.dtype)
        cat_ref[3 * hdim:, :] = (sl * zall[3 * hdim:]).astype(cat_ref.dtype)

    # --- divergence assembly: u = Wsel @ [h; T0; T1; T2] -> (3, TB) ----------
    # (Wsel has zero coefficients on the primal block, so contracting over the
    # full 4H depth costs nothing extra on the MXU and avoids a sliced load.)
    o_ref[...] = jnp.dot(wsel_ref[...], cat_ref[...],
                         preferred_element_type=jnp.float32).astype(o_ref.dtype)


@functools.partial(jax.jit, static_argnames=("tile_b",))
def divfree_forward(x, w1cols, b1_t, whbig, bh_t, wsel_pad, *, tile_b=1024):
    """Pallas wrapper: grid over batch tiles; batch rides the lane axis."""
    n, d = x.shape
    assert d == DIN
    assert tile_b % 128 == 0
    hdim = b1_t.shape[0]
    nlayers = whbig.shape[0]

    # Lane-aligned batch tile, capped so small n does not over-pad and so the
    # "parallel" grid has >= 2 tiles whenever possible (v7x has 2 TensorCores).
    tile_b = min(tile_b, 128 * pl.cdiv(n, 128))
    if n > 128:
        tile_b = min(tile_b, 128 * pl.cdiv(pl.cdiv(n, 2), 128))
    num_tiles = pl.cdiv(n, tile_b)
    n_pad = num_tiles * tile_b

    x_t = x.T                                          # (3, N), lane-dense
    if n_pad != n:
        # Padded tail columns compute garbage that is sliced away below; the
        # kernel fully rewrites its scratch each tile so nothing leaks across.
        x_t = jnp.pad(x_t, ((0, 0), (0, n_pad - n)))

    # TODO(synk): if hidden dim / num_layers grow, single-buffer the constant
    # weight inputs (pipeline_mode=pl.Buffered(1)) or raise vmem_limit_bytes;
    # at H=32 everything fits comfortably under default scoped VMEM.
    out_t = pl.pallas_call(
        dfnn_kernel,
        out_shape=jax.ShapeDtypeStruct((DIN, n_pad), jnp.float32),
        grid_spec=pltpu.PrefetchScalarGridSpec(
            num_scalar_prefetch=0,
            grid=(num_tiles,),
            in_specs=[
                pl.BlockSpec((DIN, tile_b), lambda i: (0, i)),          # x^T tile
                pl.BlockSpec((DIN, hdim, 1), lambda i: (0, 0, 0)),      # W1 cols
                pl.BlockSpec((hdim, 1), lambda i: (0, 0)),              # b1^T
                pl.BlockSpec((nlayers, 4 * hdim, 4 * hdim),
                             lambda i: (0, 0, 0)),                      # blockdiag(W_l), bf16
                pl.BlockSpec((nlayers, hdim, 1), lambda i: (0, 0, 0)),  # bh^T
                pl.BlockSpec((DIN, 4 * hdim), lambda i: (0, 0)),        # folded output, bf16
            ],
            out_specs=pl.BlockSpec((DIN, tile_b), lambda i: (0, i)),
            scratch_shapes=[pltpu.VMEM((4 * hdim, tile_b), jnp.bfloat16)],
        ),
        compiler_params=pltpu.CompilerParams(
            dimension_semantics=("parallel",)),
    )(x_t, w1cols, b1_t, whbig, bh_t, wsel_pad)

    # out_t already equals concat([rho, flux], -1) after transposing back.
    return out_t[:, :n].T                              # (N, 3)


def make_params(key, hidden=32, num_layers=2, n_mixtures=8):
    """Deterministic synthetic parameters (torch Linear shapes: (out, in))."""
    ks = jax.random.split(key, 8)
    scale_in = 1.0 / jnp.sqrt(DIN)
    scale_h = 1.0 / jnp.sqrt(hidden)
    w1 = scale_in * jax.random.normal(ks[0], (hidden, DIN), jnp.float32)
    b1 = 0.1 * jax.random.normal(ks[1], (1, hidden), jnp.float32)
    wh = scale_h * jax.random.normal(ks[2], (num_layers, hidden, hidden), jnp.float32)
    bh = 0.1 * jax.random.normal(ks[3], (num_layers, 1, hidden), jnp.float32)
    wo = scale_h * jax.random.normal(ks[4], (n_mixtures * DIN, hidden), jnp.float32)
    bo = 0.1 * jax.random.normal(ks[5], (n_mixtures * DIN,), jnp.float32)
    mix_logits = jax.random.normal(ks[6], (n_mixtures,), jnp.float32)
    return dict(w1=w1, b1=b1, wh=wh, bh=bh, wo=wo, bo=bo, mix_logits=mix_logits)


def fold_output_params(params):
    """Mixture-weighted output weights + antisymmetric divergence selection
    folded into wsel (3, 3, H): u_i = sum_k (wsel[k] @ T_k)_i."""
    n_mix = params["mix_logits"].shape[0]
    hdim = params["wo"].shape[1]
    a = jax.nn.softmax(params["mix_logits"])                       # (M,)
    weff = jnp.einsum("m,mph->ph", a,
                      params["wo"].reshape(n_mix, DIN, hdim))      # (3, H)
    # msel[k, i, p] = coefficient of d e_p / d x_k inside u_i
    msel = jnp.array(
        [[[0., 0., 0.], [-1., 0., 0.], [0., -1., 0.]],   # k = 0
         [[1., 0., 0.], [0., 0., 0.], [0., 0., -1.]],    # k = 1
         [[0., 1., 0.], [0., 0., 1.], [0., 0., 0.]]],    # k = 2
        jnp.float32)
    wsel = jnp.einsum("kip,ph->kih", msel, weff)                   # (3, 3, H)
    return wsel


def fold_kernel_params(params):
    """Host-side one-time parameter transforms: no in-kernel transposes,
    column slicing, concatenates, or per-tangent matmuls; MXU operands bf16."""
    w1 = params["w1"]                                  # (H, 3)
    hidden = w1.shape[0]
    nlayers = params["wh"].shape[0]

    b1_t = params["b1"].T                              # (H, 1) f32
    bh_t = jnp.transpose(params["bh"], (0, 2, 1))      # (L, H, 1) f32

    # W1 columns stacked on a leading axis: w1cols[k] = W1[:, k] as (H, 1)
    w1cols = w1.T.reshape(DIN, hidden, 1)              # (3, H, 1) f32

    # block-diagonal kron(I4, W_l): primal + 3 tangents in one matmul per layer
    whbig = jnp.zeros((nlayers, 4 * hidden, 4 * hidden), jnp.float32)
    for p in range(4):
        whbig = whbig.at[:, p * hidden:(p + 1) * hidden,
                         p * hidden:(p + 1) * hidden].set(params["wh"])
    whbig = whbig.astype(jnp.bfloat16)                 # MXU operand

    # mixture + antisymmetric selection folded into one (3, 4H) output matrix;
    # the leading H columns (primal block of `cat`) are zero.
    wsel = fold_output_params(params)                  # (k, i, H)
    wsel_cat = jnp.transpose(wsel, (1, 0, 2)).reshape(DIN, DIN * hidden)
    wsel_pad = jnp.concatenate(
        [jnp.zeros((DIN, hidden), jnp.float32), wsel_cat],
        axis=1).astype(jnp.bfloat16)                   # (3, 4H) MXU operand

    return dict(w1cols=w1cols, b1_t=b1_t, whbig=whbig, bh_t=bh_t,
                wsel_pad=wsel_pad)


def reference_forward(x, params):
    """Pure-JAX f32 reference: jacfwd of the antisymmetric entries, divergence."""
    w1, b1 = params["w1"], params["b1"][0]
    wh, bh = params["wh"], params["bh"][:, 0, :]
    wo, bo = params["wo"], params["bo"]
    n_mix = params["mix_logits"].shape[0]
    a = jax.nn.softmax(params["mix_logits"])

    def entries(xi):  # xi: (3,) -> strictly-upper-triangular entries e (3,)
        h = jnp.tanh(w1 @ xi + b1)
        for l in range(wh.shape[0]):
            h = jnp.tanh(wh[l] @ h + bh[l])
        y = (wo @ h + bo).reshape(n_mix, DIN)
        return (a[:, None] * y).sum(0)

    def u_single(xi):
        j = jax.jacfwd(entries)(xi)          # j[p, k] = d e_p / d x_k
        u0 = j[0, 1] + j[1, 2]
        u1 = -j[0, 0] + j[2, 2]
        u2 = -j[1, 0] - j[2, 1]
        return jnp.stack([u0, u1, u2])

    return jax.vmap(u_single)(x)


if __name__ == "__main__":
    key = jax.random.PRNGKey(0)
    k_param, k_x = jax.random.split(key)

    # 4 lane-aligned tiles -> even "parallel" grid for v7x's two TensorCores.
    N, HIDDEN, NUM_LAYERS, N_MIX, TILE_B = 1024, 32, 2, 8, 256
    params = make_params(k_param, hidden=HIDDEN, num_layers=NUM_LAYERS,
                         n_mixtures=N_MIX)
    kp = fold_kernel_params(params)

    # x = (t, x, y) samples
    x = jax.random.normal(k_x, (N, DIN), jnp.float32)

    out = divfree_forward(x, kp["w1cols"], kp["b1_t"], kp["whbig"],
                          kp["bh_t"], kp["wsel_pad"], tile_b=TILE_B)
    out = jax.block_until_ready(out)

    ref = jax.block_until_ready(reference_forward(x, params))
    assert out.shape == (N, DIN)
    # bf16 MXU operands (per perf review) -> tolerance loosened vs f32 reference.
    err = float(jnp.max(jnp.abs(out - ref)))
    assert jnp.allclose(out, ref, rtol=5e-2, atol=5e-2), err

    print("KERNEL_OK")
</pallas_src>

<mosaic_0001>
module attributes {stable_mosaic.version = 11 : i64} {
  func.func @dfnn_kernel(%arg0: i32, %arg1: memref<3x256xf32, #tpu.memory_space<vmem>>, %arg2: memref<3x32x1xf32, #tpu.memory_space<vmem>>, %arg3: memref<32x1xf32, #tpu.memory_space<vmem>>, %arg4: memref<2x128x128xbf16, #tpu.memory_space<vmem>>, %arg5: memref<2x32x1xf32, #tpu.memory_space<vmem>>, %arg6: memref<3x128xbf16, #tpu.memory_space<vmem>>, %arg7: memref<3x256xf32, #tpu.memory_space<vmem>>, %arg8: memref<128x256xbf16, #tpu.memory_space<vmem>>) attributes {dimension_semantics = [#tpu.dimension_semantics<parallel>], iteration_bounds = array<i64: 4>, scalar_prefetch = 0 : i64, scratch_operands = 1 : i64, tpu.core_type = #tpu.core_type<tc>, window_params = [{transform_indices = @transform_0, window_bounds = array<i64: 3, 256>}, {pipeline_mode = #tpu.pipeline_mode<synchronous>, transform_indices = @transform_1, window_bounds = array<i64: 3, 32, 1>}, {pipeline_mode = #tpu.pipeline_mode<synchronous>, transform_indices = @transform_2, window_bounds = array<i64: 32, 1>}, {pipeline_mode = #tpu.pipeline_mode<synchronous>, transform_indices = @transform_3, window_bounds = array<i64: 2, 128, 128>}, {pipeline_mode = #tpu.pipeline_mode<synchronous>, transform_indices = @transform_4, window_bounds = array<i64: 2, 32, 1>}, {pipeline_mode = #tpu.pipeline_mode<synchronous>, transform_indices = @transform_5, window_bounds = array<i64: 3, 128>}, {transform_indices = @transform_6, window_bounds = array<i64: 3, 256>}]} {
    %c0 = arith.constant 0 : index
    %c0_0 = arith.constant 0 : index
    %0 = vector.load %arg1[%c0, %c0_0] : memref<3x256xf32, #tpu.memory_space<vmem>>, vector<3x256xf32>
    %c0_1 = arith.constant 0 : index
    %c0_2 = arith.constant 0 : index
    %c0_3 = arith.constant 0 : index
    %1 = vector.load %arg2[%c0_1, %c0_2, %c0_3] : memref<3x32x1xf32, #tpu.memory_space<vmem>>, vector<1x32x1xf32>
    %2 = vector.shape_cast %1 : vector<1x32x1xf32> to vector<32x1xf32>
    %c1 = arith.constant 1 : index
    %c0_4 = arith.constant 0 : index
    %c0_5 = arith.constant 0 : index
    %3 = vector.load %arg2[%c1, %c0_4, %c0_5] : memref<3x32x1xf32, #tpu.memory_space<vmem>>, vector<1x32x1xf32>
    %4 = vector.shape_cast %3 : vector<1x32x1xf32> to vector<32x1xf32>
    %c2 = arith.constant 2 : index
    %c0_6 = arith.constant 0 : index
    %c0_7 = arith.constant 0 : index
    %5 = vector.load %arg2[%c2, %c0_6, %c0_7] : memref<3x32x1xf32, #tpu.memory_space<vmem>>, vector<1x32x1xf32>
    %6 = vector.shape_cast %5 : vector<1x32x1xf32> to vector<32x1xf32>
    %7 = vector.extract_strided_slice %0 {offsets = [0, 0], sizes = [1, 256], strides = [1, 1]} : vector<3x256xf32> to vector<1x256xf32>
    %8 = vector.broadcast %2 : vector<32x1xf32> to vector<32x256xf32>
    %9 = vector.broadcast %7 : vector<1x256xf32> to vector<32x256xf32>
    %10 = arith.mulf %8, %9 : vector<32x256xf32>
    %11 = vector.extract_strided_slice %0 {offsets = [1, 0], sizes = [1, 256], strides = [1, 1]} : vector<3x256xf32> to vector<1x256xf32>
    %12 = vector.broadcast %4 : vector<32x1xf32> to vector<32x256xf32>
    %13 = vector.broadcast %11 : vector<1x256xf32> to vector<32x256xf32>
    %14 = arith.mulf %12, %13 : vector<32x256xf32>
    %15 = arith.addf %10, %14 : vector<32x256xf32>
    %16 = vector.extract_strided_slice %0 {offsets = [2, 0], sizes = [1, 256], strides = [1, 1]} : vector<3x256xf32> to vector<1x256xf32>
    %17 = vector.broadcast %6 : vector<32x1xf32> to vector<32x256xf32>
    %18 = vector.broadcast %16 : vector<1x256xf32> to vector<32x256xf32>
    %19 = arith.mulf %17, %18 : vector<32x256xf32>
    %20 = arith.addf %15, %19 : vector<32x256xf32>
    %c0_8 = arith.constant 0 : index
    %c0_9 = arith.constant 0 : index
    %21 = vector.load %arg3[%c0_8, %c0_9] : memref<32x1xf32, #tpu.memory_space<vmem>>, vector<32x1xf32>
    %22 = vector.broadcast %21 : vector<32x1xf32> to vector<32x256xf32>
    %23 = arith.addf %20, %22 : vector<32x256xf32>
    %24 = math.tanh %23 : vector<32x256xf32>
    %25 = arith.mulf %24, %24 : vector<32x256xf32>
    %cst = arith.constant 1.000000e+00 : f32
    %26 = vector.broadcast %cst : f32 to vector<32x256xf32>
    %27 = arith.subf %26, %25 : vector<32x256xf32>
    %28 = arith.truncf %24 : vector<32x256xf32> to vector<32x256xbf16>
    %c0_10 = arith.constant 0 : index
    %c0_11 = arith.constant 0 : index
    %29 = vector.load %arg8[%c0_10, %c0_11] : memref<128x256xbf16, #tpu.memory_space<vmem>>, vector<32x256xbf16>
    tpu.vector_store %arg8[%c0_10, %c0_11], %28 {strides = array<i32>} : memref<128x256xbf16, #tpu.memory_space<vmem>>, vector<32x256xbf16>,
    %30 = vector.broadcast %2 : vector<32x1xf32> to vector<32x256xf32>
    %31 = arith.mulf %27, %30 : vector<32x256xf32>
    %32 = arith.truncf %31 : vector<32x256xf32> to vector<32x256xbf16>
    %c32 = arith.constant 32 : index
    %c0_12 = arith.constant 0 : index
    %33 = vector.load %arg8[%c32, %c0_12] : memref<128x256xbf16, #tpu.memory_space<vmem>>, vector<32x256xbf16>
    tpu.vector_store %arg8[%c32, %c0_12], %32 {strides = array<i32>} : memref<128x256xbf16, #tpu.memory_space<vmem>>, vector<32x256xbf16>,
    %34 = vector.broadcast %4 : vector<32x1xf32> to vector<32x256xf32>
    %35 = arith.mulf %27, %34 : vector<32x256xf32>
    %36 = arith.truncf %35 : vector<32x256xf32> to vector<32x256xbf16>
    %c64 = arith.constant 64 : index
    %c0_13 = arith.constant 0 : index
    %37 = vector.load %arg8[%c64, %c0_13] : memref<128x256xbf16, #tpu.memory_space<vmem>>, vector<32x256xbf16>
    tpu.vector_store %arg8[%c64, %c0_13], %36 {strides = array<i32>} : memref<128x256xbf16, #tpu.memory_space<vmem>>, vector<32x256xbf16>,
    %38 = vector.broadcast %6 : vector<32x1xf32> to vector<32x256xf32>
    %39 = arith.mulf %27, %38 : vector<32x256xf32>
    %40 = arith.truncf %39 : vector<32x256xf32> to vector<32x256xbf16>
    %c96 = arith.constant 96 : index
    %c0_14 = arith.constant 0 : index
    %41 = vector.load %arg8[%c96, %c0_14] : memref<128x256xbf16, #tpu.memory_space<vmem>>, vector<32x256xbf16>
    tpu.vector_store %arg8[%c96, %c0_14], %40 {strides = array<i32>} : memref<128x256xbf16, #tpu.memory_space<vmem>>, vector<32x256xbf16>,
    %c0_15 = arith.constant 0 : index
    %c0_16 = arith.constant 0 : index
    %c0_17 = arith.constant 0 : index
    %42 = vector.load %arg4[%c0_15, %c0_16, %c0_17] : memref<2x128x128xbf16, #tpu.memory_space<vmem>>, vector<1x128x128xbf16>
    %43 = vector.shape_cast %42 : vector<1x128x128xbf16> to vector<128x128xbf16>
    %c0_18 = arith.constant 0 : index
    %c0_19 = arith.constant 0 : index
    %44 = vector.load %arg8[%c0_18, %c0_19] : memref<128x256xbf16, #tpu.memory_space<vmem>>, vector<128x256xbf16>
    %cst_20 = arith.constant dense<0.000000e+00> : vector<128x256xf32>
    %45 = tpu.matmul %43, %44, %cst_20 {dimension_numbers = #tpu.dot_dimension_numbers<[1], [0], [0], [1], [0, 0, 1, 1], [], []>} : vector<128x128xbf16>, vector<128x256xbf16>, vector<128x256xf32> -> vector<128x256xf32>
    %46 = vector.extract_strided_slice %45 {offsets = [0, 0], sizes = [32, 256], strides = [1, 1]} : vector<128x256xf32> to vector<32x256xf32>
    %c0_21 = arith.constant 0 : index
    %c0_22 = arith.constant 0 : index
    %c0_23 = arith.constant 0 : index
    %47 = vector.load %arg5[%c0_21, %c0_22, %c0_23] : memref<2x32x1xf32, #tpu.memory_space<vmem>>, vector<1x32x1xf32>
    %48 = vector.shape_cast %47 : vector<1x32x1xf32> to vector<32x1xf32>
    %49 = vector.broadcast %48 : vector<32x1xf32> to vector<32x256xf32>
    %50 = arith.addf %46, %49 : vector<32x256xf32>
    %51 = math.tanh %50 : vector<32x256xf32>
    %52 = arith.mulf %51, %51 : vector<32x256xf32>
    %cst_24 = arith.constant 1.000000e+00 : f32
    %53 = vector.broadcast %cst_24 : f32 to vector<32x256xf32>
    %54 = arith.subf %53, %52 : vector<32x256xf32>
    %55 = arith.truncf %51 : vector<32x256xf32> to vector<32x256xbf16>
    %c0_25 = arith.constant 0 : index
    %c0_26 = arith.constant 0 : index
    %56 = vector.load %arg8[%c0_25, %c0_26] : memref<128x256xbf16, #tpu.memory_space<vmem>>, vector<32x256xbf16>
    tpu.vector_store %arg8[%c0_25, %c0_26], %55 {strides = array<i32>} : memref<128x256xbf16, #tpu.memory_space<vmem>>, vector<32x256xbf16>,
    %57 = vector.extract_strided_slice %45 {offsets = [32, 0], sizes = [32, 256], strides = [1, 1]} : vector<128x256xf32> to vector<32x256xf32>
    %58 = arith.mulf %54, %57 : vector<32x256xf32>
    %59 = arith.truncf %58 : vector<32x256xf32> to vector<32x256xbf16>
    %c32_27 = arith.constant 32 : index
    %c0_28 = arith.constant 0 : index
    %60 = vector.load %arg8[%c32_27, %c0_28] : memref<128x256xbf16, #tpu.memory_space<vmem>>, vector<32x256xbf16>
    tpu.vector_store %arg8[%c32_27, %c0_28], %59 {strides = array<i32>} : memref<128x256xbf16, #tpu.memory_space<vmem>>, vector<32x256xbf16>,
    %61 = vector.extract_strided_slice %45 {offsets = [64, 0], sizes = [32, 256], strides = [1, 1]} : vector<128x256xf32> to vector<32x256xf32>
    %62 = arith.mulf %54, %61 : vector<32x256xf32>
    %63 = arith.truncf %62 : vector<32x256xf32> to vector<32x256xbf16>
    %c64_29 = arith.constant 64 : index
    %c0_30 = arith.constant 0 : index
    %64 = vector.load %arg8[%c64_29, %c0_30] : memref<128x256xbf16, #tpu.memory_space<vmem>>, vector<32x256xbf16>
    tpu.vector_store %arg8[%c64_29, %c0_30], %63 {strides = array<i32>} : memref<128x256xbf16, #tpu.memory_space<vmem>>, vector<32x256xbf16>,
    %65 = vector.extract_strided_slice %45 {offsets = [96, 0], sizes = [32, 256], strides = [1, 1]} : vector<128x256xf32> to vector<32x256xf32>
    %66 = arith.mulf %54, %65 : vector<32x256xf32>
    %67 = arith.truncf %66 : vector<32x256xf32> to vector<32x256xbf16>
    %c96_31 = arith.constant 96 : index
    %c0_32 = arith.constant 0 : index
    %68 = vector.load %arg8[%c96_31, %c0_32] : memref<128x256xbf16, #tpu.memory_space<vmem>>, vector<32x256xbf16>
    tpu.vector_store %arg8[%c96_31, %c0_32], %67 {strides = array<i32>} : memref<128x256xbf16, #tpu.memory_space<vmem>>, vector<32x256xbf16>,
    %c1_33 = arith.constant 1 : index
    %c0_34 = arith.constant 0 : index
    %c0_35 = arith.constant 0 : index
    %69 = vector.load %arg4[%c1_33, %c0_34, %c0_35] : memref<2x128x128xbf16, #tpu.memory_space<vmem>>, vector<1x128x128xbf16>
    %70 = vector.shape_cast %69 : vector<1x128x128xbf16> to vector<128x128xbf16>
    %c0_36 = arith.constant 0 : index
    %c0_37 = arith.constant 0 : index
    %71 = vector.load %arg8[%c0_36, %c0_37] : memref<128x256xbf16, #tpu.memory_space<vmem>>, vector<128x256xbf16>
    %cst_38 = arith.constant dense<0.000000e+00> : vector<128x256xf32>
    %72 = tpu.matmul %70, %71, %cst_38 {dimension_numbers = #tpu.dot_dimension_numbers<[1], [0], [0], [1], [0, 0, 1, 1], [], []>} : vector<128x128xbf16>, vector<128x256xbf16>, vector<128x256xf32> -> vector<128x256xf32>
    %73 = vector.extract_strided_slice %72 {offsets = [0, 0], sizes = [32, 256], strides = [1, 1]} : vector<128x256xf32> to vector<32x256xf32>
    %c1_39 = arith.constant 1 : index
    %c0_40 = arith.constant 0 : index
    %c0_41 = arith.constant 0 : index
    %74 = vector.load %arg5[%c1_39, %c0_40, %c0_41] : memref<2x32x1xf32, #tpu.memory_space<vmem>>, vector<1x32x1xf32>
    %75 = vector.shape_cast %74 : vector<1x32x1xf32> to vector<32x1xf32>
    %76 = vector.broadcast %75 : vector<32x1xf32> to vector<32x256xf32>
    %77 = arith.addf %73, %76 : vector<32x256xf32>
    %78 = math.tanh %77 : vector<32x256xf32>
    %79 = arith.mulf %78, %78 : vector<32x256xf32>
    %cst_42 = arith.constant 1.000000e+00 : f32
    %80 = vector.broadcast %cst_42 : f32 to vector<32x256xf32>
    %81 = arith.subf %80, %79 : vector<32x256xf32>
    %82 = arith.truncf %78 : vector<32x256xf32> to vector<32x256xbf16>
    %c0_43 = arith.constant 0 : index
    %c0_44 = arith.constant 0 : index
    %83 = vector.load %arg8[%c0_43, %c0_44] : memref<128x256xbf16, #tpu.memory_space<vmem>>, vector<32x256xbf16>
    tpu.vector_store %arg8[%c0_43, %c0_44], %82 {strides = array<i32>} : memref<128x256xbf16, #tpu.memory_space<vmem>>, vector<32x256xbf16>,
    %84 = vector.extract_strided_slice %72 {offsets = [32, 0], sizes = [32, 256], strides = [1, 1]} : vector<128x256xf32> to vector<32x256xf32>
    %85 = arith.mulf %81, %84 : vector<32x256xf32>
    %86 = arith.truncf %85 : vector<32x256xf32> to vector<32x256xbf16>
    %c32_45 = arith.constant 32 : index
    %c0_46 = arith.constant 0 : index
    %87 = vector.load %arg8[%c32_45, %c0_46] : memref<128x256xbf16, #tpu.memory_space<vmem>>, vector<32x256xbf16>
    tpu.vector_store %arg8[%c32_45, %c0_46], %86 {strides = array<i32>} : memref<128x256xbf16, #tpu.memory_space<vmem>>, vector<32x256xbf16>,
    %88 = vector.extract_strided_slice %72 {offsets = [64, 0], sizes = [32, 256], strides = [1, 1]} : vector<128x256xf32> to vector<32x256xf32>
    %89 = arith.mulf %81, %88 : vector<32x256xf32>
    %90 = arith.truncf %89 : vector<32x256xf32> to vector<32x256xbf16>
    %c64_47 = arith.constant 64 : index
    %c0_48 = arith.constant 0 : index
    %91 = vector.load %arg8[%c64_47, %c0_48] : memref<128x256xbf16, #tpu.memory_space<vmem>>, vector<32x256xbf16>
    tpu.vector_store %arg8[%c64_47, %c0_48], %90 {strides = array<i32>} : memref<128x256xbf16, #tpu.memory_space<vmem>>, vector<32x256xbf16>,
    %92 = vector.extract_strided_slice %72 {offsets = [96, 0], sizes = [32, 256], strides = [1, 1]} : vector<128x256xf32> to vector<32x256xf32>
    %93 = arith.mulf %81, %92 : vector<32x256xf32>
    %94 = arith.truncf %93 : vector<32x256xf32> to vector<32x256xbf16>
    %c96_49 = arith.constant 96 : index
    %c0_50 = arith.constant 0 : index
    %95 = vector.load %arg8[%c96_49, %c0_50] : memref<128x256xbf16, #tpu.memory_space<vmem>>, vector<32x256xbf16>
    tpu.vector_store %arg8[%c96_49, %c0_50], %94 {strides = array<i32>} : memref<128x256xbf16, #tpu.memory_space<vmem>>, vector<32x256xbf16>,
    %c0_51 = arith.constant 0 : index
    %c0_52 = arith.constant 0 : index
    %96 = vector.load %arg6[%c0_51, %c0_52] : memref<3x128xbf16, #tpu.memory_space<vmem>>, vector<3x128xbf16>
    %c0_53 = arith.constant 0 : index
    %c0_54 = arith.constant 0 : index
    %97 = vector.load %arg8[%c0_53, %c0_54] : memref<128x256xbf16, #tpu.memory_space<vmem>>, vector<128x256xbf16>
    %cst_55 = arith.constant dense<0.000000e+00> : vector<3x256xf32>
    %98 = tpu.matmul %96, %97, %cst_55 {dimension_numbers = #tpu.dot_dimension_numbers<[1], [0], [0], [1], [0, 0, 1, 1], [], []>} : vector<3x128xbf16>, vector<128x256xbf16>, vector<3x256xf32> -> vector<3x256xf32>
    %c0_56 = arith.constant 0 : index
    %c0_57 = arith.constant 0 : index
    %99 = vector.load %arg7[%c0_56, %c0_57] : memref<3x256xf32, #tpu.memory_space<vmem>>, vector<3x256xf32>
    tpu.vector_store %arg7[%c0_56, %c0_57], %98 {strides = array<i32>} : memref<3x256xf32, #tpu.memory_space<vmem>>, vector<3x256xf32>,
    return
  }
  func.func @transform_0(%arg0: i32) -> (i32, i32) {
    %c0_i32 = arith.constant 0 : i32
    %c0_i32_0 = arith.constant 0 : i32
    return %c0_i32, %arg0 : i32, i32
  }
  func.func @transform_1(%arg0: i32) -> (i32, i32, i32) {
    %c0_i32 = arith.constant 0 : i32
    %c0_i32_0 = arith.constant 0 : i32
    %c0_i32_1 = arith.constant 0 : i32
    %c0_i32_2 = arith.constant 0 : i32
    return %c0_i32, %c0_i32_0, %c0_i32_1 : i32, i32, i32
  }
  func.func @transform_2(%arg0: i32) -> (i32, i32) {
    %c0_i32 = arith.constant 0 : i32
    %c0_i32_0 = arith.constant 0 : i32
    %c0_i32_1 = arith.constant 0 : i32
    return %c0_i32, %c0_i32_0 : i32, i32
  }
  func.func @transform_3(%arg0: i32) -> (i32, i32, i32) {
    %c0_i32 = arith.constant 0 : i32
    %c0_i32_0 = arith.constant 0 : i32
    %c0_i32_1 = arith.constant 0 : i32
    %c0_i32_2 = arith.constant 0 : i32
    return %c0_i32, %c0_i32_0, %c0_i32_1 : i32, i32, i32
  }
  func.func @transform_4(%arg0: i32) -> (i32, i32, i32) {
    %c0_i32 = arith.constant 0 : i32
    %c0_i32_0 = arith.constant 0 : i32
    %c0_i32_1 = arith.constant 0 : i32
    %c0_i32_2 = arith.constant 0 : i32
    return %c0_i32, %c0_i32_0, %c0_i32_1 : i32, i32, i32
  }
  func.func @transform_5(%arg0: i32) -> (i32, i32) {
    %c0_i32 = arith.constant 0 : i32
    %c0_i32_0 = arith.constant 0 : i32
    %c0_i32_1 = arith.constant 0 : i32
    return %c0_i32, %c0_i32_0 : i32, i32
  }
  func.func @transform_6(%arg0: i32) -> (i32, i32) {
    %c0_i32 = arith.constant 0 : i32
    %c0_i32_0 = arith.constant 0 : i32
    return %c0_i32, %arg0 : i32, i32
  }
}

</mosaic_0001>

<llo_original>
// kernel: divfree_forward.1
$region0: #{divfree_forward.1}
  #allocation0 [shape = 'u32[]', space=smem, size = 0x4, offset = 0x4, fixed_abs, tag = 'smem constant byte address 0x4 - core index']
  #allocation1 [shape = 'u32[144,128]{1,0:T(1,128)}', space=vmem, size = 0x12000, scoped, tag = 'internal scratch']
  #allocation2 [shape = 'bf16[128,256]{1,0:T(16,128)(2,1)}', space=vmem, size = 0x10000, scoped, tag = 'scratch operand']
  %s0 = inlined_call_operand.vmem [shape: f32[3,1024], index: 0, kind: input, shape index: {}]
  %s1 = inlined_call_operand.vmem [shape: f32[3,32,1], index: 1, kind: input, shape index: {}]
  %s2 = inlined_call_operand.vmem [shape: f32[32,1], index: 2, kind: input, shape index: {}]
  %s3 = inlined_call_operand.vmem [shape: bf16[2,128,128], index: 3, kind: input, shape index: {}]
  %s4 = inlined_call_operand.vmem [shape: f32[2,32,1], index: 4, kind: input, shape index: {}]
  %s5 = inlined_call_operand.vmem [shape: bf16[3,128], index: 5, kind: input, shape index: {}]
  %s6 = inlined_call_operand.hbm [shape: f32[3,1024], index: 6, kind: output, shape index: {}]
  %s7 = sld [smem:[#allocation0]]
  $region57: #{divfree_forward.1} parent=0
    _
  %s9 = ssub.s32 1, %s7
  %s10 = scalar_select 0, %s9, %s7
  $region1: #{divfree_forward.1} parent=0
    #allocation3 [shape = 'u8[8192]{0}', space=vmem, size = 0x2000, scoped, tag = 'output window, operand 0']
    #allocation4 [shape = 's32[2]{0}', space=sflag, size = 0x8, scoped, tag = 'scoped memory for divfree_forward.1']
    %11 = vsyncpa [#allocation4], 0
    %s12 = scalar_lea.sflag [#allocation4], 1
    %13 = vsyncpa %s12, 0
    loop: start=0, step=1, limit=6
    $region2: #{divfree_forward.1} parent=1 // loop_pre_header
      _
    $region3: #{divfree_forward.1} parent=1 // loop_header
      %s15 = sphi 0, %s19
      %p16 = scmp.ge.s32.totalorder %s15, 6
      %s25 = sphi 0, %s27
      %s28 = sphi 0, %s25
      %s29 = sphi 0, %s28
      %s45 = sphi 0, %s29
      %s49 = sphi 0, %s49
      %s51 = sphi 0, %s49
      %s52 = sphi 0, %s51
      %s66 = sphi 0, %s52
      %s70 = sphi 0, %s70
      %s72 = sphi 0, %s70
      %s73 = sphi 0, %s72
      %s87 = sphi 0, %s73
      %s91 = sphi 0, %s91
      %s93 = sphi 0, %s91
      %s94 = sphi 0, %s93
      %s108 = sphi 0, %s94
      %s112 = sphi 0, %s112
      %s114 = sphi 0, %s112
      %s115 = sphi 0, %s114
      %s129 = sphi 0, %s115
      %s133 = sphi 0, %s133
      %s135 = sphi 0, %s133
      %s136 = sphi 0, %s135
      %s150 = sphi 0, %s136
      %s156 = sphi 0, %s158
      %s159 = sphi 0, %s156
      %s160 = sphi 0, %s159
      %s176 = sphi 0, %s160
    $region4: #{divfree_forward.1} parent=1 // loop_header_branch
      %18 = sbr.rel (%p16) target = $region8
    $region5: #{divfree_forward.1} parent=1 // loop_body
      %s20 = ssub.s32 %s15, 1
      %s21 = ssub.s32 %s15, 2
      %s22 = sadd.s32 %s15, 1
      %s23 = ssub.s32 %s15, %s22
      %p24 = scmp.eq.s32.totalorder %s23, 0
      %s26 = sadd.s32 %s25, 1
      %s27 = scalar_select %p24, %s25, %s26
      %p30 = pneg %p24
      %p31 = scmp.eq.s32.totalorder %s15, 3
      %p32 = por %p30, %p31
      %p33 = scmp.ne.s32.totalorder %s25, %s28
      %p34 = scmp.eq.s32.totalorder %s15, 0
      %p35 = por %p33, %p34
      %p36 = scmp.ne.s32.totalorder %s25, %s28
      %p37 = scmp.eq.s32.totalorder %s20, 3
      %p38 = por %p36, %p37
      %p39 = scmp.ne.s32.totalorder %s28, %s29
      %p40 = scmp.eq.s32.totalorder %s20, 0
      %p41 = por %p39, %p40
      %p42 = scmp.ne.s32.totalorder %s28, %s29
      %p43 = scmp.eq.s32.totalorder %s21, 3
      %p44 = por %p42, %p43
      %p46 = scmp.ne.s32.totalorder %s29, %s45
      %p47 = scmp.eq.s32.totalorder %s21, 0
      %p48 = por %p46, %p47
      %s50 = sadd.s32 %s49, 1
      %p53 = scmp.eq.s32.totalorder %s15, 3
      %p54 = scmp.ne.s32.totalorder %s49, %s51
      %p55 = scmp.eq.s32.totalorder %s15, 0
      %p56 = por %p54, %p55
      %p57 = scmp.ne.s32.totalorder %s49, %s51
      %p58 = scmp.eq.s32.totalorder %s20, 3
      %p59 = por %p57, %p58
      %p60 = scmp.ne.s32.totalorder %s51, %s52
      %p61 = scmp.eq.s32.totalorder %s20, 0
      %p62 = por %p60, %p61
      %p63 = scmp.ne.s32.totalorder %s51, %s52
      %p64 = scmp.eq.s32.totalorder %s21, 3
      %p65 = por %p63, %p64
      %p67 = scmp.ne.s32.totalorder %s52, %s66
      %p68 = scmp.eq.s32.totalorder %s21, 0
      %p69 = por %p67, %p68
      %s71 = sadd.s32 %s70, 1
      %p74 = scmp.eq.s32.totalorder %s15, 3
      %p75 = scmp.ne.s32.totalorder %s70, %s72
      %p76 = scmp.eq.s32.totalorder %s15, 0
      %p77 = por %p75, %p76
      %p78 = scmp.ne.s32.totalorder %s70, %s72
      %p79 = scmp.eq.s32.totalorder %s20, 3
      %p80 = por %p78, %p79
      %p81 = scmp.ne.s32.totalorder %s72, %s73
      %p82 = scmp.eq.s32.totalorder %s20, 0
      %p83 = por %p81, %p82
      %p84 = scmp.ne.s32.totalorder %s72, %s73
      %p85 = scmp.eq.s32.totalorder %s21, 3
      %p86 = por %p84, %p85
      %p88 = scmp.ne.s32.totalorder %s73, %s87
      %p89 = scmp.eq.s32.totalorder %s21, 0
      %p90 = por %p88, %p89
      %s92 = sadd.s32 %s91, 1
      %p95 = scmp.eq.s32.totalorder %s15, 3
      %p96 = scmp.ne.s32.totalorder %s91, %s93
      %p97 = scmp.eq.s32.totalorder %s15, 0
      %p98 = por %p96, %p97
      %p99 = scmp.ne.s32.totalorder %s91, %s93
      %p100 = scmp.eq.s32.totalorder %s20, 3
      %p101 = por %p99, %p100
      %p102 = scmp.ne.s32.totalorder %s93, %s94
      %p103 = scmp.eq.s32.totalorder %s20, 0
      %p104 = por %p102, %p103
      %p105 = scmp.ne.s32.totalorder %s93, %s94
      %p106 = scmp.eq.s32.totalorder %s21, 3
      %p107 = por %p105, %p106
      %p109 = scmp.ne.s32.totalorder %s94, %s108
      %p110 = scmp.eq.s32.totalorder %s21, 0
      %p111 = por %p109, %p110
      %s113 = sadd.s32 %s112, 1
      %p116 = scmp.eq.s32.totalorder %s15, 3
      %p117 = scmp.ne.s32.totalorder %s112, %s114
      %p118 = scmp.eq.s32.totalorder %s15, 0
      %p119 = por %p117, %p118
      %p120 = scmp.ne.s32.totalorder %s112, %s114
      %p121 = scmp.eq.s32.totalorder %s20, 3
      %p122 = por %p120, %p121
      %p123 = scmp.ne.s32.totalorder %s114, %s115
      %p124 = scmp.eq.s32.totalorder %s20, 0
      %p125 = por %p123, %p124
      %p126 = scmp.ne.s32.totalorder %s114, %s115
      %p127 = scmp.eq.s32.totalorder %s21, 3
      %p128 = por %p126, %p127
      %p130 = scmp.ne.s32.totalorder %s115, %s129
      %p131 = scmp.eq.s32.totalorder %s21, 0
      %p132 = por %p130, %p131
      %s134 = sadd.s32 %s133, 1
      %p137 = scmp.eq.s32.totalorder %s15, 3
      %p138 = scmp.ne.s32.totalorder %s133, %s135
      %p139 = scmp.eq.s32.totalorder %s15, 0
      %p140 = por %p138, %p139
      %p141 = scmp.ne.s32.totalorder %s133, %s135
      %p142 = scmp.eq.s32.totalorder %s20, 3
      %p143 = por %p141, %p142
      %p144 = scmp.ne.s32.totalorder %s135, %s136
      %p145 = scmp.eq.s32.totalorder %s20, 0
      %p146 = por %p144, %p145
      %p147 = scmp.ne.s32.totalorder %s135, %s136
      %p148 = scmp.eq.s32.totalorder %s21, 3
      %p149 = por %p147, %p148
      %p151 = scmp.ne.s32.totalorder %s136, %s150
      %p152 = scmp.eq.s32.totalorder %s21, 0
      %p153 = por %p151, %p152
      %s154 = ssub.s32 %s15, %s22
      %p155 = scmp.eq.s32.totalorder %s154, 0
      %s157 = sadd.s32 %s156, 1
      %s158 = scalar_select %p155, %s156, %s157
      %p161 = pneg %p155
      %p162 = scmp.eq.s32.totalorder %s15, 3
      %p163 = por %p161, %p162
      %p164 = scmp.ne.s32.totalorder %s156, %s159
      %p165 = scmp.eq.s32.totalorder %s15, 0
      %p166 = por %p164, %p165
      %p167 = scmp.ne.s32.totalorder %s156, %s159
      %p168 = scmp.eq.s32.totalorder %s20, 3
      %p169 = por %p167, %p168
      %p170 = scmp.ne.s32.totalorder %s159, %s160
      %p171 = scmp.eq.s32.totalorder %s20, 0
      %p172 = por %p170, %p171
      %p173 = scmp.ne.s32.totalorder %s159, %s160
      %p174 = scmp.eq.s32.totalorder %s21, 3
      %p175 = por %p173, %p174
      %p177 = scmp.ne.s32.totalorder %s160, %s176
      %p178 = scmp.eq.s32.totalorder %s21, 0
      %p179 = por %p177, %p178
      %p180 = scmp.le.s32.totalorder 1, %s15
      %p181 = scmp.lt.s32.totalorder %s15, 5
      %p182 = pnand %p180, %p181
      %p183 = pneg %p182
      // Predicated region
      $region9: #{divfree_forward.1} parent=5 // pred_check
        _
      $region10: #{divfree_forward.1} parent=5 // pred_check_branch
        %185 = sbr.rel (%p182) target = $region12
      $region11: #{divfree_forward.1} parent=5 // pred_region
        %s186 = ssub.s32 %s15, 1
        // Predicated region
        $region13: #{divfree_forward.1} parent=11 // pred_check
          %p187 = pneg %p62
        $region14: #{divfree_forward.1} parent=11 // pred_check_branch
          %189 = sbr.rel (%p187) target = $region16
        $region15: #{divfree_forward.1} parent=11 // pred_region
          _
        $region16: #{divfree_forward.1} parent=11 // pred_fallthru
          _
        // Predicated region
        $region17: #{divfree_forward.1} parent=11 // pred_check
          %p190 = pneg %p83
        $region18: #{divfree_forward.1} parent=11 // pred_check_branch
          %192 = sbr.rel (%p190) target = $region20
        $region19: #{divfree_forward.1} parent=11 // pred_region
          _
        $region20: #{divfree_forward.1} parent=11 // pred_fallthru
          _
        // Predicated region
        $region21: #{divfree_forward.1} parent=11 // pred_check
          %p193 = pneg %p104
        $region22: #{divfree_forward.1} parent=11 // pred_check_branch
          %195 = sbr.rel (%p193) target = $region24
        $region23: #{divfree_forward.1} parent=11 // pred_region
          _
        $region24: #{divfree_forward.1} parent=11 // pred_fallthru
          _
        // Predicated region
        $region25: #{divfree_forward.1} parent=11 // pred_check
          %p196 = pneg %p125
        $region26: #{divfree_forward.1} parent=11 // pred_check_branch
          %198 = sbr.rel (%p196) target = $region28
        $region27: #{divfree_forward.1} parent=11 // pred_region
          _
        $region28: #{divfree_forward.1} parent=11 // pred_fallthru
          _
        // Predicated region
        $region29: #{divfree_forward.1} parent=11 // pred_check
          %p199 = pneg %p146
        $region30: #{divfree_forward.1} parent=11 // pred_check_branch
          %201 = sbr.rel (%p199) target = $region32
        $region31: #{divfree_forward.1} parent=11 // pred_region
          _
        $region32: #{divfree_forward.1} parent=11 // pred_fallthru
          _
      $region12: #{divfree_forward.1} parent=5 // pred_fallthru
        _
      %p202 = scmp.lt.s32.totalorder %s15, 4
      // Predicated region
      $region33: #{divfree_forward.1} parent=5 // pred_check
        %p203 = pneg %p202
      $region34: #{divfree_forward.1} parent=5 // pred_check_branch
        %205 = sbr.rel (%p203) target = $region36
      $region35: #{divfree_forward.1} parent=5 // pred_region
        // Predicated region
        $region37: #{divfree_forward.1} parent=35 // pred_check
          %p206 = pneg %p35
        $region38: #{divfree_forward.1} parent=35 // pred_check_branch
          %208 = sbr.rel (%p206) target = $region40
        $region39: #{divfree_forward.1} parent=35 // pred_region
          %s209 = smul.u32 2, %s15
          %p210 = scmp.lt.s32.totalorder %s209, 7
          %s211 = scalar_select %p210, %s209, 7
          %s212 = smul.addr %s211, 4
          %s213 = scalar_lea.vmem %s0, %s212
          %s214 = smul.u32 2, %s15
        $region40: #{divfree_forward.1} parent=35 // pred_fallthru
          _
      $region36: #{divfree_forward.1} parent=5 // pred_fallthru
        _
      %p215 = scmp.le.s32.totalorder 1, %s15
      %p216 = scmp.lt.s32.totalorder %s15, 5
      %p217 = pnand %p215, %p216
      %p218 = pneg %p217
      // Predicated region
      $region41: #{divfree_forward.1} parent=5 // pred_check
        _
      $region42: #{divfree_forward.1} parent=5 // pred_check_branch
        %220 = sbr.rel (%p217) target = $region44
      $region43: #{divfree_forward.1} parent=5 // pred_region
        %s221 = ssub.s32 %s15, 1
        %s222 = smul.u32 2, %s20
        %p223 = scmp.lt.s32.totalorder %s222, 7
        %s224 = scalar_select %p223, %s222, 7
        %s225 = smul.addr %s224, 4
        %s226 = scalar_lea.vmem %s0, %s225
        %p227 = pneg %p41
        %p228 = pneg %p38
        %p229 = pneg %p62
        %p230 = pneg %p59
        %p231 = pneg %p83
        %p232 = pneg %p80
        %p233 = pneg %p104
        %p234 = pneg %p101
        %p235 = pneg %p125
        %p236 = pneg %p122
        %p237 = pneg %p146
        %p238 = pneg %p143
        %p239 = pneg %p172
        %p240 = pneg %p169
        %s241 = sand.u32 %s159, 1
        %s242 = scalar_lea.sflag [#allocation4], %s241
        %s243 = sand.u32 %s159, 1
        %s244 = smul.addr %s243, 8
        %s245 = scalar_lea.vmem [#allocation3], %s244
        %s246 = smul.u32 2, %s20
        %p247 = scmp.lt.s32.totalorder %s246, 7
        %s248 = scalar_select %p247, %s246, 7
        %s249 = smul.addr %s248, 4
        %s250 = scalar_lea.vmem %s0, %s249
        %s251 = smul.u32 2, %s20
        %s252 = smul.u32 2, %s20
        %v254 = vld [vmem:[%s250] sm:$0x77]
        %v255 = vld [vmem:[%s1] sm:$0xff]
        %v256 = vld [vmem:[%s1 + $0x8] sm:$0xff]
        %v257 = vld [vmem:[%s1 + $0x10] sm:$0xff]
        %v258 = vld [vmem:[%s1 + $0x18] sm:$0xff]
        %s259 = scalar_lea.vmem %s1, 32
        %v260 = vld [vmem:[%s259] sm:$0xff]
        %v261 = vld [vmem:[%s259 + $0x8] sm:$0xff]
        %v262 = vld [vmem:[%s259 + $0x10] sm:$0xff]
        %v263 = vld [vmem:[%s259 + $0x18] sm:$0xff]
        %s264 = scalar_lea.vmem %s1, 64
        %v265 = vld [vmem:[%s264] sm:$0xff]
        %v266 = vld [vmem:[%s264 + $0x8] sm:$0xff]
        %v267 = vld [vmem:[%s264 + $0x10] sm:$0xff]
        %v268 = vld [vmem:[%s264 + $0x18] sm:$0xff]
        %270 = vset.pattern.permute.xlu0 0
        %271 = vperm.xlu0 %270, %v255
        %v272 = vpop.permute.xlu0 %271
        %275 = vset.pattern.permute.xlu0 0
        %276 = vperm.xlu0 %275, %v256
        %v277 = vpop.permute.xlu0 %276
        %280 = vset.pattern.permute.xlu0 0
        %281 = vperm.xlu0 %280, %v257
        %v282 = vpop.permute.xlu0 %281
        %285 = vset.pattern.permute.xlu0 0
        %286 = vperm.xlu0 %285, %v258
        %v287 = vpop.permute.xlu0 %286
        %v290 = vlaneseq
        %v291 = vshrl.u32 %v290, 7
        %v292 = vsub.s32 0, %v291
        %v293 = vrot.slane %v254, %v292
        %v294 = vlaneseq
        %v295 = vshrl.u32 %v294, 7
        %v296 = vsub.s32 4, %v295
        %v297 = vrot.slane %v254, %v296
        %v300 = vlaneseq
        %v301 = vshrl.u32 %v300, 7
        %v302 = vsub.s32 0, %v301
        %v303 = vrot.slane %v293, %v302
        %v304 = vlaneseq
        %v305 = vshrl.u32 %v304, 7
        %v306 = vsub.s32 0, %v305
        %v307 = vrot.slane %v297, %v306
        %v308 = vmul.f32 %v272, %v303
        %v309 = vmul.f32 %v272, %v307
        %v310 = vmul.f32 %v277, %v303
        %v311 = vmul.f32 %v277, %v307
        %v312 = vmul.f32 %v282, %v303
        %v313 = vmul.f32 %v282, %v307
        %v314 = vmul.f32 %v287, %v303
        %v315 = vmul.f32 %v287, %v307
        %317 = vset.pattern.permute.xlu0 0
        %318 = vperm.xlu0 %317, %v260
        %v319 = vpop.permute.xlu0 %318
        %322 = vset.pattern.permute.xlu0 0
        %323 = vperm.xlu0 %322, %v261
        %v324 = vpop.permute.xlu0 %323
        %327 = vset.pattern.permute.xlu0 0
        %328 = vperm.xlu0 %327, %v262
        %v329 = vpop.permute.xlu0 %328
        %332 = vset.pattern.permute.xlu0 0
        %333 = vperm.xlu0 %332, %v263
        %v334 = vpop.permute.xlu0 %333
        %v336 = vlaneseq
        %v337 = vshrl.u32 %v336, 7
        %v338 = vsub.s32 1, %v337
        %v339 = vrot.slane %v254, %v338
        %v340 = vlaneseq
        %v341 = vshrl.u32 %v340, 7
        %v342 = vsub.s32 5, %v341
        %v343 = vrot.slane %v254, %v342
        %v346 = vlaneseq
        %v347 = vshrl.u32 %v346, 7
        %v348 = vsub.s32 1, %v347
        %v349 = vrot.slane %v339, %v348
        %v350 = vlaneseq
        %v351 = vshrl.u32 %v350, 7
        %v352 = vsub.s32 1, %v351
        %v353 = vrot.slane %v343, %v352
        %v354 = vmul.f32 %v319, %v349
        %v355 = vmul.f32 %v319, %v353
        %v356 = vmul.f32 %v324, %v349
        %v357 = vmul.f32 %v324, %v353
        %v358 = vmul.f32 %v329, %v349
        %v359 = vmul.f32 %v329, %v353
        %v360 = vmul.f32 %v334, %v349
        %v361 = vmul.f32 %v334, %v353
        %v362 = vadd.f32 %v308, %v354
        %v363 = vadd.f32 %v309, %v355
        %v364 = vadd.f32 %v310, %v356
        %v365 = vadd.f32 %v311, %v357
        %v366 = vadd.f32 %v312, %v358
        %v367 = vadd.f32 %v313, %v359
        %v368 = vadd.f32 %v314, %v360
        %v369 = vadd.f32 %v315, %v361
        %371 = vset.pattern.permute.xlu0 0
        %372 = vperm.xlu0 %371, %v265
        %v373 = vpop.permute.xlu0 %372
        %376 = vset.pattern.permute.xlu0 0
        %377 = vperm.xlu0 %376, %v266
        %v378 = vpop.permute.xlu0 %377
        %381 = vset.pattern.permute.xlu0 0
        %382 = vperm.xlu0 %381, %v267
        %v383 = vpop.permute.xlu0 %382
        %386 = vset.pattern.permute.xlu0 0
        %387 = vperm.xlu0 %386, %v268
        %v388 = vpop.permute.xlu0 %387
        %v390 = vlaneseq
        %v391 = vshrl.u32 %v390, 7
        %v392 = vsub.s32 2, %v391
        %v393 = vrot.slane %v254, %v392
        %v394 = vlaneseq
        %v395 = vshrl.u32 %v394, 7
        %v396 = vsub.s32 6, %v395
        %v397 = vrot.slane %v254, %v396
        %v400 = vlaneseq
        %v401 = vshrl.u32 %v400, 7
        %v402 = vsub.s32 2, %v401
        %v403 = vrot.slane %v393, %v402
        %v404 = vlaneseq
        %v405 = vshrl.u32 %v404, 7
        %v406 = vsub.s32 2, %v405
        %v407 = vrot.slane %v397, %v406
        %v408 = vmul.f32 %v373, %v403
        %v409 = vmul.f32 %v373, %v407
        %v410 = vmul.f32 %v378, %v403
        %v411 = vmul.f32 %v378, %v407
        %v412 = vmul.f32 %v383, %v403
        %v413 = vmul.f32 %v383, %v407
        %v414 = vmul.f32 %v388, %v403
        %v415 = vmul.f32 %v388, %v407
        %v416 = vadd.f32 %v362, %v408
        %v417 = vadd.f32 %v363, %v409
        %v418 = vadd.f32 %v364, %v410
        %v419 = vadd.f32 %v365, %v411
        %v420 = vadd.f32 %v366, %v412
        %v421 = vadd.f32 %v367, %v413
        %v422 = vadd.f32 %v368, %v414
        %v423 = vadd.f32 %v369, %v415
        %v424 = vld [vmem:[%s2] sm:$0xff]
        %v425 = vld [vmem:[%s2 + $0x8] sm:$0xff]
        %v426 = vld [vmem:[%s2 + $0x10] sm:$0xff]
        %v427 = vld [vmem:[%s2 + $0x18] sm:$0xff]
        %429 = vset.pattern.permute.xlu0 0
        %430 = vperm.xlu0 %429, %v424
        %v431 = vpop.permute.xlu0 %430
        %434 = vset.pattern.permute.xlu0 0
        %435 = vperm.xlu0 %434, %v425
        %v436 = vpop.permute.xlu0 %435
        %439 = vset.pattern.permute.xlu0 0
        %440 = vperm.xlu0 %439, %v426
        %v441 = vpop.permute.xlu0 %440
        %444 = vset.pattern.permute.xlu0 0
        %445 = vperm.xlu0 %444, %v427
        %v446 = vpop.permute.xlu0 %445
        %v448 = vadd.f32 %v416, %v431
        %v449 = vadd.f32 %v417, %v431
        %v450 = vadd.f32 %v418, %v436
        %v451 = vadd.f32 %v419, %v436
        %v452 = vadd.f32 %v420, %v441
        %v453 = vadd.f32 %v421, %v441
        %v454 = vadd.f32 %v422, %v446
        %v455 = vadd.f32 %v423, %v446
        %v456 = vtanh.pop %v448
        %v457 = vtanh.pop %v449
        %v458 = vtanh.pop %v450
        %v459 = vtanh.pop %v451
        %v460 = vtanh.pop %v452
        %v461 = vtanh.pop %v453
        %v462 = vtanh.pop %v454
        %v463 = vtanh.pop %v455
        %v464 = vmul.f32 %v456, %v456
        %v465 = vmul.f32 %v457, %v457
        %v466 = vmul.f32 %v458, %v458
        %v467 = vmul.f32 %v459, %v459
        %v468 = vmul.f32 %v460, %v460
        %v469 = vmul.f32 %v461, %v461
        %v470 = vmul.f32 %v462, %v462
        %v471 = vmul.f32 %v463, %v463
        %v472 = vsub.f32 1.0, %v464
        %v473 = vsub.f32 1.0, %v465
        %v474 = vsub.f32 1.0, %v466
        %v475 = vsub.f32 1.0, %v467
        %v476 = vsub.f32 1.0, %v468
        %v477 = vsub.f32 1.0, %v469
        %v478 = vsub.f32 1.0, %v470
        %v479 = vsub.f32 1.0, %v471
        %v480 = vpack.c.bf16 %v458, %v456
        %v481 = vpack.c.bf16 %v459, %v457
        %v482 = vpack.c.bf16 %v462, %v460
        %v483 = vpack.c.bf16 %v463, %v461
        %484 = vst [vmem:[#allocation2] sm:$0xff] %v480
        %485 = vst [vmem:[#allocation2 + $0x8] sm:$0xff] %v481
        %486 = vst [vmem:[#allocation2 + $0x10] sm:$0xff] %v482
        %487 = vst [vmem:[#allocation2 + $0x18] sm:$0xff] %v483
        %v488 = vmul.f32 %v472, %v272
        %v489 = vmul.f32 %v473, %v272
        %v490 = vmul.f32 %v474, %v277
        %v491 = vmul.f32 %v475, %v277
        %v492 = vmul.f32 %v476, %v282
        %v493 = vmul.f32 %v477, %v282
        %v494 = vmul.f32 %v478, %v287
        %v495 = vmul.f32 %v479, %v287
        %v496 = vpack.c.bf16 %v490, %v488
        %v497 = vpack.c.bf16 %v491, %v489
        %v498 = vpack.c.bf16 %v494, %v492
        %v499 = vpack.c.bf16 %v495, %v493
        %500 = vst [vmem:[#allocation2 + $0x20] sm:$0xff] %v496
        %501 = vst [vmem:[#allocation2 + $0x28] sm:$0xff] %v497
        %502 = vst [vmem:[#allocation2 + $0x30] sm:$0xff] %v498
        %503 = vst [vmem:[#allocation2 + $0x38] sm:$0xff] %v499
        %v504 = vmul.f32 %v472, %v319
        %v505 = vmul.f32 %v473, %v319
        %v506 = vmul.f32 %v474, %v324
        %v507 = vmul.f32 %v475, %v324
        %v508 = vmul.f32 %v476, %v329
        %v509 = vmul.f32 %v477, %v329
        %v510 = vmul.f32 %v478, %v334
        %v511 = vmul.f32 %v479, %v334
        %v512 = vpack.c.bf16 %v506, %v504
        %v513 = vpack.c.bf16 %v507, %v505
        %v514 = vpack.c.bf16 %v510, %v508
        %v515 = vpack.c.bf16 %v511, %v509
        %516 = vst [vmem:[#allocation2 + $0x40] sm:$0xff] %v512
        %517 = vst [vmem:[#allocation2 + $0x48] sm:$0xff] %v513
        %518 = vst [vmem:[#allocation2 + $0x50] sm:$0xff] %v514
        %519 = vst [vmem:[#allocation2 + $0x58] sm:$0xff] %v515
        %v520 = vmul.f32 %v472, %v373
        %v521 = vmul.f32 %v473, %v373
        %v522 = vmul.f32 %v474, %v378
        %v523 = vmul.f32 %v475, %v378
        %v524 = vmul.f32 %v476, %v383
        %v525 = vmul.f32 %v477, %v383
        %v526 = vmul.f32 %v478, %v388
        %v527 = vmul.f32 %v479, %v388
        %v528 = vpack.c.bf16 %v522, %v520
        %v529 = vpack.c.bf16 %v523, %v521
        %v530 = vpack.c.bf16 %v526, %v524
        %v531 = vpack.c.bf16 %v527, %v525
        %532 = vst [vmem:[#allocation2 + $0x60] sm:$0xff] %v528
        %533 = vst [vmem:[#allocation2 + $0x68] sm:$0xff] %v529
        %534 = vst [vmem:[#allocation2 + $0x70] sm:$0xff] %v530
        %535 = vst [vmem:[#allocation2 + $0x78] sm:$0xff] %v531
        %v536 = vld [vmem:[%s3] sm:$0xf]
        %v537 = vld [vmem:[%s3 + $0x4] sm:$0xf]
        %v538 = vld [vmem:[%s3 + $0x8] sm:$0xf]
        %v539 = vld [vmem:[%s3 + $0xc] sm:$0xf]
        %v540 = vld [vmem:[%s3 + $0x10] sm:$0xf]
        %v541 = vld [vmem:[%s3 + $0x14] sm:$0xf]
        %v542 = vld [vmem:[%s3 + $0x18] sm:$0xf]
        %v543 = vld [vmem:[%s3 + $0x1c] sm:$0xf]
        %v544 = vld [vmem:[%s3 + $0x20] sm:$0xf]
        %v545 = vld [vmem:[%s3 + $0x24] sm:$0xf]
        %v546 = vld [vmem:[%s3 + $0x28] sm:$0xf]
        %v547 = vld [vmem:[%s3 + $0x2c] sm:$0xf]
        %v548 = vld [vmem:[%s3 + $0x30] sm:$0xf]
        %v549 = vld [vmem:[%s3 + $0x34] sm:$0xf]
        %v550 = vld [vmem:[%s3 + $0x38] sm:$0xf]
        %v551 = vld [vmem:[%s3 + $0x3c] sm:$0xf]
        %v552 = vld [vmem:[#allocation2] sm:$0xff]
        %v553 = vld [vmem:[#allocation2 + $0x8] sm:$0xff]
        %v554 = vld [vmem:[#allocation2 + $0x10] sm:$0xff]
        %v555 = vld [vmem:[#allocation2 + $0x18] sm:$0xff]
        %v556 = vld [vmem:[#allocation2 + $0x20] sm:$0xff]
        %v557 = vld [vmem:[#allocation2 + $0x28] sm:$0xff]
        %v558 = vld [vmem:[#allocation2 + $0x30] sm:$0xff]
        %v559 = vld [vmem:[#allocation2 + $0x38] sm:$0xff]
        %v560 = vld [vmem:[#allocation2 + $0x40] sm:$0xff]
        %v561 = vld [vmem:[#allocation2 + $0x48] sm:$0xff]
        %v562 = vld [vmem:[#allocation2 + $0x50] sm:$0xff]
        %v563 = vld [vmem:[#allocation2 + $0x58] sm:$0xff]
        %v564 = vld [vmem:[#allocation2 + $0x60] sm:$0xff]
        %v565 = vld [vmem:[#allocation2 + $0x68] sm:$0xff]
        %v566 = vld [vmem:[#allocation2 + $0x70] sm:$0xff]
        %v567 = vld [vmem:[#allocation2 + $0x78] sm:$0xff]
        %v584 = vunpack.c.l.b16 %v536
        %v585 = vunpack.c.l.b16 %v537
        %v586 = vunpack.c.l.b16 %v538
        %v587 = vunpack.c.l.b16 %v539
        %v588 = vunpack.c.l.b16 %v540
        %v589 = vunpack.c.l.b16 %v541
        %v590 = vunpack.c.l.b16 %v542
        %v591 = vunpack.c.l.b16 %v543
        %v592 = vunpack.c.l.b16 %v544
        %v593 = vunpack.c.l.b16 %v545
        %v594 = vunpack.c.l.b16 %v546
        %v595 = vunpack.c.l.b16 %v547
        %v596 = vunpack.c.l.b16 %v548
        %v597 = vunpack.c.l.b16 %v549
        %v598 = vunpack.c.l.b16 %v550
        %v599 = vunpack.c.l.b16 %v551
        %v600 = vpack.c.b16 %v585, %v584
        %v601 = vpack.c.b16 %v587, %v586
        %v602 = vpack.c.b16 %v589, %v588
        %v603 = vpack.c.b16 %v591, %v590
        %v604 = vpack.c.b16 %v593, %v592
        %v605 = vpack.c.b16 %v595, %v594
        %v606 = vpack.c.b16 %v597, %v596
        %v607 = vpack.c.b16 %v599, %v598
        %616 = vmatprep.subr.bf16.mxu0 %v553
        %617 = vmatpush1.bf16.msra.mxu0 %v552
        %618 = vmatprep.subr.bf16.mxu0 %v555
        %619 = vmatpush1.bf16.msra.mxu0 %v554
        %620 = vmatprep.subr.bf16.mxu0 %v557
        %621 = vmatpush1.bf16.msra.mxu0 %v556
        %622 = vmatprep.subr.bf16.mxu0 %v559
        %623 = vmatpush1.bf16.msra.mxu0 %v558
        %624 = vmatprep.subr.bf16.mxu0 %v561
        %625 = vmatpush1.bf16.msra.mxu0 %v560
        %626 = vmatprep.subr.bf16.mxu0 %v563
        %627 = vmatpush1.bf16.msra.mxu0 %v562
        %628 = vmatprep.subr.bf16.mxu0 %v565
        %629 = vmatpush1.bf16.msra.mxu0 %v564
        %630 = vmatprep.subr.bf16.mxu0 %v567
        %631 = vmatpush1.bf16.msra.mxu0 %v566
        %632 = vmatprep.subr.bf16.mxu0 0
        %633 = vmatpush1.bf16.msra.mxu0 0
        %634 = vmatprep.subr.bf16.mxu0 0
        %635 = vmatpush1.bf16.msra.mxu0 0
        %636 = vmatprep.subr.bf16.mxu0 0
        %637 = vmatpush1.bf16.msra.mxu0 0
        %638 = vmatprep.subr.bf16.mxu0 0
        %639 = vmatpush1.bf16.msra.mxu0 0
        %640 = vmatprep.subr.bf16.mxu0 0
        %641 = vmatpush1.bf16.msra.mxu0 0
        %642 = vmatprep.subr.bf16.mxu0 0
        %643 = vmatpush1.bf16.msra.mxu0 0
        %644 = vmatprep.subr.bf16.mxu0 0
        %645 = vmatpush1.bf16.msra.mxu0 0
        %646 = vmatprep.subr.bf16.mxu0 0
        %647 = vmatpush1.bf16.msra.mxu0 0
        %648 = vmatprep.mubr.bf16.mxu0 0
        %649 = vmatmul.mubr.bf16.gmra.mrb[0].mxu0 %v600
        %v650 = vpop.f32.mrb[0].mxu0
        %v651 = vadd.f32 0.0, %v650
        %v652 = vpop.f32.mrb[0].mxu0
        %v653 = vadd.f32 0.0, %v652
        %v654 = vpop.f32.mrb[0].mxu0
        %v655 = vadd.f32 0.0, %v654
        %v656 = vpop.f32.mrb[0].mxu0
        %v657 = vadd.f32 0.0, %v656
        %658 = vmatprep.mubr.bf16.mxu0 0
        %659 = vmatmul.mubr.bf16.gmra.mrb[0].mxu0 %v601
        %v660 = vpop.f32.mrb[0].mxu0
        %v661 = vadd.f32 0.0, %v660
        %v662 = vpop.f32.mrb[0].mxu0
        %v663 = vadd.f32 0.0, %v662
        %v664 = vpop.f32.mrb[0].mxu0
        %v665 = vadd.f32 0.0, %v664
        %v666 = vpop.f32.mrb[0].mxu0
        %v667 = vadd.f32 0.0, %v666
        %668 = vmatprep.mubr.bf16.mxu0 0
        %669 = vmatmul.mubr.bf16.gmra.mrb[0].mxu0 %v602
        %v670 = vpop.f32.mrb[0].mxu0
        %v671 = vadd.f32 0.0, %v670
        %v672 = vpop.f32.mrb[0].mxu0
        %v673 = vadd.f32 0.0, %v672
        %v674 = vpop.f32.mrb[0].mxu0
        %v675 = vadd.f32 0.0, %v674
        %v676 = vpop.f32.mrb[0].mxu0
        %v677 = vadd.f32 0.0, %v676
        %678 = vmatprep.mubr.bf16.mxu0 0
        %679 = vmatmul.mubr.bf16.gmra.mrb[0].mxu0 %v603
        %v680 = vpop.f32.mrb[0].mxu0
        %v681 = vadd.f32 0.0, %v680
        %v682 = vpop.f32.mrb[0].mxu0
        %v683 = vadd.f32 0.0, %v682
        %v684 = vpop.f32.mrb[0].mxu0
        %v685 = vadd.f32 0.0, %v684
        %v686 = vpop.f32.mrb[0].mxu0
        %v687 = vadd.f32 0.0, %v686
        %688 = vmatprep.mubr.bf16.mxu0 0
        %689 = vmatmul.mubr.bf16.gmra.mrb[0].mxu0 %v604
        %v690 = vpop.f32.mrb[0].mxu0
        %v691 = vadd.f32 0.0, %v690
        %v692 = vpop.f32.mrb[0].mxu0
        %v693 = vadd.f32 0.0, %v692
        %v694 = vpop.f32.mrb[0].mxu0
        %v695 = vadd.f32 0.0, %v694
        %v696 = vpop.f32.mrb[0].mxu0
        %v697 = vadd.f32 0.0, %v696
        %698 = vmatprep.mubr.bf16.mxu0 0
        %699 = vmatmul.mubr.bf16.gmra.mrb[0].mxu0 %v605
        %v700 = vpop.f32.mrb[0].mxu0
        %v701 = vadd.f32 0.0, %v700
        %v702 = vpop.f32.mrb[0].mxu0
        %v703 = vadd.f32 0.0, %v702
        %v704 = vpop.f32.mrb[0].mxu0
        %v705 = vadd.f32 0.0, %v704
        %v706 = vpop.f32.mrb[0].mxu0
        %v707 = vadd.f32 0.0, %v706
        %708 = vmatprep.mubr.bf16.mxu0 0
        %709 = vmatmul.mubr.bf16.gmra.mrb[0].mxu0 %v606
        %v710 = vpop.f32.mrb[0].mxu0
        %v711 = vadd.f32 0.0, %v710
        %v712 = vpop.f32.mrb[0].mxu0
        %v713 = vadd.f32 0.0, %v712
        %v714 = vpop.f32.mrb[0].mxu0
        %v715 = vadd.f32 0.0, %v714
        %v716 = vpop.f32.mrb[0].mxu0
        %v717 = vadd.f32 0.0, %v716
        %718 = vmatprep.mubr.bf16.mxu0 0
        %719 = vmatmul.mubr.bf16.gmra.mrb[0].mxu0 %v607
        %v720 = vpop.f32.mrb[0].mxu0
        %v721 = vadd.f32 0.0, %v720
        %v722 = vpop.f32.mrb[0].mxu0
        %v723 = vadd.f32 0.0, %v722
        %v724 = vpop.f32.mrb[0].mxu0
        %v725 = vadd.f32 0.0, %v724
        %v726 = vpop.f32.mrb[0].mxu0
        %v727 = vadd.f32 0.0, %v726
        %728 = vdwg.mxu0
        %v729 = vld [vmem:[%s4] sm:$0xff]
        %v730 = vld [vmem:[%s4 + $0x8] sm:$0xff]
        %v731 = vld [vmem:[%s4 + $0x10] sm:$0xff]
        %v732 = vld [vmem:[%s4 + $0x18] sm:$0xff]
        %734 = vset.pattern.permute.xlu0 0
        %735 = vperm.xlu0 %734, %v729
        %v736 = vpop.permute.xlu0 %735
        %739 = vset.pattern.permute.xlu0 0
        %740 = vperm.xlu0 %739, %v730
        %v741 = vpop.permute.xlu0 %740
        %744 = vset.pattern.permute.xlu0 0
        %745 = vperm.xlu0 %744, %v731
        %v746 = vpop.permute.xlu0 %745
        %749 = vset.pattern.permute.xlu0 0
        %750 = vperm.xlu0 %749, %v732
        %v751 = vpop.permute.xlu0 %750
        %v753 = vadd.f32 %v651, %v736
        %v754 = vadd.f32 %v653, %v736
        %v755 = vadd.f32 %v655, %v741
        %v756 = vadd.f32 %v657, %v741
        %v757 = vadd.f32 %v661, %v746
        %v758 = vadd.f32 %v663, %v746
        %v759 = vadd.f32 %v665, %v751
        %v760 = vadd.f32 %v667, %v751
        %v761 = vtanh.pop %v753
        %v762 = vtanh.pop %v754
        %v763 = vtanh.pop %v755
        %v764 = vtanh.pop %v756
        %v765 = vtanh.pop %v757
        %v766 = vtanh.pop %v758
        %v767 = vtanh.pop %v759
        %v768 = vtanh.pop %v760
        %v769 = vmul.f32 %v761, %v761
        %v770 = vmul.f32 %v762, %v762
        %v771 = vmul.f32 %v763, %v763
        %v772 = vmul.f32 %v764, %v764
        %v773 = vmul.f32 %v765, %v765
        %v774 = vmul.f32 %v766, %v766
        %v775 = vmul.f32 %v767, %v767
        %v776 = vmul.f32 %v768, %v768
        %v777 = vsub.f32 1.0, %v769
        %v778 = vsub.f32 1.0, %v770
        %v779 = vsub.f32 1.0, %v771
        %v780 = vsub.f32 1.0, %v772
        %v781 = vsub.f32 1.0, %v773
        %v782 = vsub.f32 1.0, %v774
        %v783 = vsub.f32 1.0, %v775
        %v784 = vsub.f32 1.0, %v776
        %v785 = vpack.c.bf16 %v763, %v761
        %v786 = vpack.c.bf16 %v764, %v762
        %v787 = vpack.c.bf16 %v767, %v765
        %v788 = vpack.c.bf16 %v768, %v766
        %789 = vst [vmem:[#allocation2] sm:$0xff] %v785
        %790 = vst [vmem:[#allocation2 + $0x8] sm:$0xff] %v786
        %791 = vst [vmem:[#allocation2 + $0x10] sm:$0xff] %v787
        %792 = vst [vmem:[#allocation2 + $0x18] sm:$0xff] %v788
        %v793 = vmul.f32 %v777, %v671
        %v794 = vmul.f32 %v778, %v673
        %v795 = vmul.f32 %v779, %v675
        %v796 = vmul.f32 %v780, %v677
        %v797 = vmul.f32 %v781, %v681
        %v798 = vmul.f32 %v782, %v683
        %v799 = vmul.f32 %v783, %v685
        %v800 = vmul.f32 %v784, %v687
        %v801 = vpack.c.bf16 %v795, %v793
        %v802 = vpack.c.bf16 %v796, %v794
        %v803 = vpack.c.bf16 %v799, %v797
        %v804 = vpack.c.bf16 %v800, %v798
        %805 = vst [vmem:[#allocation2 + $0x20] sm:$0xff] %v801
        %806 = vst [vmem:[#allocation2 + $0x28] sm:$0xff] %v802
        %807 = vst [vmem:[#allocation2 + $0x30] sm:$0xff] %v803
        %808 = vst [vmem:[#allocation2 + $0x38] sm:$0xff] %v804
        %v809 = vmul.f32 %v777, %v691
        %v810 = vmul.f32 %v778, %v693
        %v811 = vmul.f32 %v779, %v695
        %v812 = vmul.f32 %v780, %v697
        %v813 = vmul.f32 %v781, %v701
        %v814 = vmul.f32 %v782, %v703
        %v815 = vmul.f32 %v783, %v705
        %v816 = vmul.f32 %v784, %v707
        %v817 = vpack.c.bf16 %v811, %v809
        %v818 = vpack.c.bf16 %v812, %v810
        %v819 = vpack.c.bf16 %v815, %v813
        %v820 = vpack.c.bf16 %v816, %v814
        %821 = vst [vmem:[#allocation2 + $0x40] sm:$0xff] %v817
        %822 = vst [vmem:[#allocation2 + $0x48] sm:$0xff] %v818
        %823 = vst [vmem:[#allocation2 + $0x50] sm:$0xff] %v819
        %824 = vst [vmem:[#allocation2 + $0x58] sm:$0xff] %v820
        %v825 = vmul.f32 %v777, %v711
        %v826 = vmul.f32 %v778, %v713
        %v827 = vmul.f32 %v779, %v715
        %v828 = vmul.f32 %v780, %v717
        %v829 = vmul.f32 %v781, %v721
        %v830 = vmul.f32 %v782, %v723
        %v831 = vmul.f32 %v783, %v725
        %v832 = vmul.f32 %v784, %v727
        %v833 = vpack.c.bf16 %v827, %v825
        %v834 = vpack.c.bf16 %v828, %v826
        %v835 = vpack.c.bf16 %v831, %v829
        %v836 = vpack.c.bf16 %v832, %v830
        %837 = vst [vmem:[#allocation2 + $0x60] sm:$0xff] %v833
        %838 = vst [vmem:[#allocation2 + $0x68] sm:$0xff] %v834
        %839 = vst [vmem:[#allocation2 + $0x70] sm:$0xff] %v835
        %840 = vst [vmem:[#allocation2 + $0x78] sm:$0xff] %v836
        %s841 = scalar_lea.vmem %s3, 64
        %v842 = vld [vmem:[%s841] sm:$0xf]
        %v843 = vld [vmem:[%s841 + $0x4] sm:$0xf]
        %v844 = vld [vmem:[%s841 + $0x8] sm:$0xf]
        %v845 = vld [vmem:[%s841 + $0xc] sm:$0xf]
        %v846 = vld [vmem:[%s841 + $0x10] sm:$0xf]
        %v847 = vld [vmem:[%s841 + $0x14] sm:$0xf]
        %v848 = vld [vmem:[%s841 + $0x18] sm:$0xf]
        %v849 = vld [vmem:[%s841 + $0x1c] sm:$0xf]
        %v850 = vld [vmem:[%s841 + $0x20] sm:$0xf]
        %v851 = vld [vmem:[%s841 + $0x24] sm:$0xf]
        %v852 = vld [vmem:[%s841 + $0x28] sm:$0xf]
        %v853 = vld [vmem:[%s841 + $0x2c] sm:$0xf]
        %v854 = vld [vmem:[%s841 + $0x30] sm:$0xf]
        %v855 = vld [vmem:[%s841 + $0x34] sm:$0xf]
        %v856 = vld [vmem:[%s841 + $0x38] sm:$0xf]
        %v857 = vld [vmem:[%s841 + $0x3c] sm:$0xf]
        %v858 = vld [vmem:[#allocation2] sm:$0xff]
        %v859 = vld [vmem:[#allocation2 + $0x8] sm:$0xff]
        %v860 = vld [vmem:[#allocation2 + $0x10] sm:$0xff]
        %v861 = vld [vmem:[#allocation2 + $0x18] sm:$0xff]
        %v862 = vld [vmem:[#allocation2 + $0x20] sm:$0xff]
        %v863 = vld [vmem:[#allocation2 + $0x28] sm:$0xff]
        %v864 = vld [vmem:[#allocation2 + $0x30] sm:$0xff]
        %v865 = vld [vmem:[#allocation2 + $0x38] sm:$0xff]
        %v866 = vld [vmem:[#allocation2 + $0x40] sm:$0xff]
        %v867 = vld [vmem:[#allocation2 + $0x48] sm:$0xff]
        %v868 = vld [vmem:[#allocation2 + $0x50] sm:$0xff]
        %v869 = vld [vmem:[#allocation2 + $0x58] sm:$0xff]
        %v870 = vld [vmem:[#allocation2 + $0x60] sm:$0xff]
        %v871 = vld [vmem:[#allocation2 + $0x68] sm:$0xff]
        %v872 = vld [vmem:[#allocation2 + $0x70] sm:$0xff]
        %v873 = vld [vmem:[#allocation2 + $0x78] sm:$0xff]
        %v890 = vunpack.c.l.b16 %v842
        %v891 = vunpack.c.l.b16 %v843
        %v892 = vunpack.c.l.b16 %v844
        %v893 = vunpack.c.l.b16 %v845
        %v894 = vunpack.c.l.b16 %v846
        %v895 = vunpack.c.l.b16 %v847
        %v896 = vunpack.c.l.b16 %v848
        %v897 = vunpack.c.l.b16 %v849
        %v898 = vunpack.c.l.b16 %v850
        %v899 = vunpack.c.l.b16 %v851
        %v900 = vunpack.c.l.b16 %v852
        %v901 = vunpack.c.l.b16 %v853
        %v902 = vunpack.c.l.b16 %v854
        %v903 = vunpack.c.l.b16 %v855
        %v904 = vunpack.c.l.b16 %v856
        %v905 = vunpack.c.l.b16 %v857
        %v906 = vpack.c.b16 %v891, %v890
        %v907 = vpack.c.b16 %v893, %v892
        %v908 = vpack.c.b16 %v895, %v894
        %v909 = vpack.c.b16 %v897, %v896
        %v910 = vpack.c.b16 %v899, %v898
        %v911 = vpack.c.b16 %v901, %v900
        %v912 = vpack.c.b16 %v903, %v902
        %v913 = vpack.c.b16 %v905, %v904
        %922 = vmatprep.subr.bf16.mxu0 %v859
        %923 = vmatpush1.bf16.msra.mxu0 %v858
        %924 = vmatprep.subr.bf16.mxu0 %v861
        %925 = vmatpush1.bf16.msra.mxu0 %v860
        %926 = vmatprep.subr.bf16.mxu0 %v863
        %927 = vmatpush1.bf16.msra.mxu0 %v862
        %928 = vmatprep.subr.bf16.mxu0 %v865
        %929 = vmatpush1.bf16.msra.mxu0 %v864
        %930 = vmatprep.subr.bf16.mxu0 %v867
        %931 = vmatpush1.bf16.msra.mxu0 %v866
        %932 = vmatprep.subr.bf16.mxu0 %v869
        %933 = vmatpush1.bf16.msra.mxu0 %v868
        %934 = vmatprep.subr.bf16.mxu0 %v871
        %935 = vmatpush1.bf16.msra.mxu0 %v870
        %936 = vmatprep.subr.bf16.mxu0 %v873
        %937 = vmatpush1.bf16.msra.mxu0 %v872
        %938 = vmatprep.subr.bf16.mxu0 0
        %939 = vmatpush1.bf16.msra.mxu0 0
        %940 = vmatprep.subr.bf16.mxu0 0
        %941 = vmatpush1.bf16.msra.mxu0 0
        %942 = vmatprep.subr.bf16.mxu0 0
        %943 = vmatpush1.bf16.msra.mxu0 0
        %944 = vmatprep.subr.bf16.mxu0 0
        %945 = vmatpush1.bf16.msra.mxu0 0
        %946 = vmatprep.subr.bf16.mxu0 0
        %947 = vmatpush1.bf16.msra.mxu0 0
        %948 = vmatprep.subr.bf16.mxu0 0
        %949 = vmatpush1.bf16.msra.mxu0 0
        %950 = vmatprep.subr.bf16.mxu0 0
        %951 = vmatpush1.bf16.msra.mxu0 0
        %952 = vmatprep.subr.bf16.mxu0 0
        %953 = vmatpush1.bf16.msra.mxu0 0
        %954 = vmatprep.mubr.bf16.mxu0 0
        %955 = vmatmul.mubr.bf16.gmra.mrb[0].mxu0 %v906
        %v956 = vpop.f32.mrb[0].mxu0
        %v957 = vadd.f32 0.0, %v956
        %v958 = vpop.f32.mrb[0].mxu0
        %v959 = vadd.f32 0.0, %v958
        %v960 = vpop.f32.mrb[0].mxu0
        %v961 = vadd.f32 0.0, %v960
        %v962 = vpop.f32.mrb[0].mxu0
        %v963 = vadd.f32 0.0, %v962
        %964 = vmatprep.mubr.bf16.mxu0 0
        %965 = vmatmul.mubr.bf16.gmra.mrb[0].mxu0 %v907
        %v966 = vpop.f32.mrb[0].mxu0
        %v967 = vadd.f32 0.0, %v966
        %v968 = vpop.f32.mrb[0].mxu0
        %v969 = vadd.f32 0.0, %v968
        %v970 = vpop.f32.mrb[0].mxu0
        %v971 = vadd.f32 0.0, %v970
        %v972 = vpop.f32.mrb[0].mxu0
        %v973 = vadd.f32 0.0, %v972
        %974 = vmatprep.mubr.bf16.mxu0 0
        %975 = vmatmul.mubr.bf16.gmra.mrb[0].mxu0 %v908
        %v976 = vpop.f32.mrb[0].mxu0
        %v977 = vadd.f32 0.0, %v976
        %v978 = vpop.f32.mrb[0].mxu0
        %v979 = vadd.f32 0.0, %v978
        %v980 = vpop.f32.mrb[0].mxu0
        %v981 = vadd.f32 0.0, %v980
        %v982 = vpop.f32.mrb[0].mxu0
        %v983 = vadd.f32 0.0, %v982
        %984 = vmatprep.mubr.bf16.mxu0 0
        %985 = vmatmul.mubr.bf16.gmra.mrb[0].mxu0 %v909
        %v986 = vpop.f32.mrb[0].mxu0
        %v987 = vadd.f32 0.0, %v986
        %v988 = vpop.f32.mrb[0].mxu0
        %v989 = vadd.f32 0.0, %v988
        %v990 = vpop.f32.mrb[0].mxu0
        %v991 = vadd.f32 0.0, %v990
        %v992 = vpop.f32.mrb[0].mxu0
        %v993 = vadd.f32 0.0, %v992
        %994 = vmatprep.mubr.bf16.mxu0 0
        %995 = vmatmul.mubr.bf16.gmra.mrb[0].mxu0 %v910
        %v996 = vpop.f32.mrb[0].mxu0
        %v997 = vadd.f32 0.0, %v996
        %v998 = vpop.f32.mrb[0].mxu0
        %v999 = vadd.f32 0.0, %v998
        %v1000 = vpop.f32.mrb[0].mxu0
        %v1001 = vadd.f32 0.0, %v1000
        %v1002 = vpop.f32.mrb[0].mxu0
        %v1003 = vadd.f32 0.0, %v1002
        %1004 = vmatprep.mubr.bf16.mxu0 0
        %1005 = vmatmul.mubr.bf16.gmra.mrb[0].mxu0 %v911
        %v1006 = vpop.f32.mrb[0].mxu0
        %v1007 = vadd.f32 0.0, %v1006
        %v1008 = vpop.f32.mrb[0].mxu0
        %v1009 = vadd.f32 0.0, %v1008
        %v1010 = vpop.f32.mrb[0].mxu0
        %v1011 = vadd.f32 0.0, %v1010
        %v1012 = vpop.f32.mrb[0].mxu0
        %v1013 = vadd.f32 0.0, %v1012
        %1014 = vmatprep.mubr.bf16.mxu0 0
        %1015 = vmatmul.mubr.bf16.gmra.mrb[0].mxu0 %v912
        %v1016 = vpop.f32.mrb[0].mxu0
        %v1017 = vadd.f32 0.0, %v1016
        %v1018 = vpop.f32.mrb[0].mxu0
        %v1019 = vadd.f32 0.0, %v1018
        %v1020 = vpop.f32.mrb[0].mxu0
        %v1021 = vadd.f32 0.0, %v1020
        %v1022 = vpop.f32.mrb[0].mxu0
        %v1023 = vadd.f32 0.0, %v1022
        %1024 = vmatprep.mubr.bf16.mxu0 0
        %1025 = vmatmul.mubr.bf16.gmra.mrb[0].mxu0 %v913
        %v1026 = vpop.f32.mrb[0].mxu0
        %v1027 = vadd.f32 0.0, %v1026
        %v1028 = vpop.f32.mrb[0].mxu0
        %v1029 = vadd.f32 0.0, %v1028
        %v1030 = vpop.f32.mrb[0].mxu0
        %v1031 = vadd.f32 0.0, %v1030
        %v1032 = vpop.f32.mrb[0].mxu0
        %v1033 = vadd.f32 0.0, %v1032
        %1034 = vdwg.mxu0
        %s1035 = scalar_lea.vmem %s4, 32
        %v1036 = vld [vmem:[%s1035] sm:$0xff]
        %v1037 = vld [vmem:[%s1035 + $0x8] sm:$0xff]
        %v1038 = vld [vmem:[%s1035 + $0x10] sm:$0xff]
        %v1039 = vld [vmem:[%s1035 + $0x18] sm:$0xff]
        %1041 = vset.pattern.permute.xlu0 0
        %1042 = vperm.xlu0 %1041, %v1036
        %v1043 = vpop.permute.xlu0 %1042
        %1046 = vset.pattern.permute.xlu0 0
        %1047 = vperm.xlu0 %1046, %v1037
        %v1048 = vpop.permute.xlu0 %1047
        %1051 = vset.pattern.permute.xlu0 0
        %1052 = vperm.xlu0 %1051, %v1038
        %v1053 = vpop.permute.xlu0 %1052
        %1056 = vset.pattern.permute.xlu0 0
        %1057 = vperm.xlu0 %1056, %v1039
        %v1058 = vpop.permute.xlu0 %1057
        %v1060 = vadd.f32 %v957, %v1043
        %v1061 = vadd.f32 %v959, %v1043
        %v1062 = vadd.f32 %v961, %v1048
        %v1063 = vadd.f32 %v963, %v1048
        %v1064 = vadd.f32 %v967, %v1053
        %v1065 = vadd.f32 %v969, %v1053
        %v1066 = vadd.f32 %v971, %v1058
        %v1067 = vadd.f32 %v973, %v1058
        %v1068 = vtanh.pop %v1060
        %v1069 = vtanh.pop %v1061
        %v1070 = vtanh.pop %v1062
        %v1071 = vtanh.pop %v1063
        %v1072 = vtanh.pop %v1064
        %v1073 = vtanh.pop %v1065
        %v1074 = vtanh.pop %v1066
        %v1075 = vtanh.pop %v1067
        %v1076 = vmul.f32 %v1068, %v1068
        %v1077 = vmul.f32 %v1069, %v1069
        %v1078 = vmul.f32 %v1070, %v1070
        %v1079 = vmul.f32 %v1071, %v1071
        %v1080 = vmul.f32 %v1072, %v1072
        %v1081 = vmul.f32 %v1073, %v1073
        %v1082 = vmul.f32 %v1074, %v1074
        %v1083 = vmul.f32 %v1075, %v1075
        %v1084 = vsub.f32 1.0, %v1076
        %v1085 = vsub.f32 1.0, %v1077
        %v1086 = vsub.f32 1.0, %v1078
        %v1087 = vsub.f32 1.0, %v1079
        %v1088 = vsub.f32 1.0, %v1080
        %v1089 = vsub.f32 1.0, %v1081
        %v1090 = vsub.f32 1.0, %v1082
        %v1091 = vsub.f32 1.0, %v1083
        %v1092 = vpack.c.bf16 %v1070, %v1068
        %v1093 = vpack.c.bf16 %v1071, %v1069
        %v1094 = vpack.c.bf16 %v1074, %v1072
        %v1095 = vpack.c.bf16 %v1075, %v1073
        %1096 = vst [vmem:[#allocation2] sm:$0xff] %v1092
        %1097 = vst [vmem:[#allocation2 + $0x8] sm:$0xff] %v1093
        %1098 = vst [vmem:[#allocation2 + $0x10] sm:$0xff] %v1094
        %1099 = vst [vmem:[#allocation2 + $0x18] sm:$0xff] %v1095
        %v1100 = vmul.f32 %v1084, %v977
        %v1101 = vmul.f32 %v1085, %v979
        %v1102 = vmul.f32 %v1086, %v981
        %v1103 = vmul.f32 %v1087, %v983
        %v1104 = vmul.f32 %v1088, %v987
        %v1105 = vmul.f32 %v1089, %v989
        %v1106 = vmul.f32 %v1090, %v991
        %v1107 = vmul.f32 %v1091, %v993
        %v1108 = vpack.c.bf16 %v1102, %v1100
        %v1109 = vpack.c.bf16 %v1103, %v1101
        %v1110 = vpack.c.bf16 %v1106, %v1104
        %v1111 = vpack.c.bf16 %v1107, %v1105
        %1112 = vst [vmem:[#allocation2 + $0x20] sm:$0xff] %v1108
        %1113 = vst [vmem:[#allocation2 + $0x28] sm:$0xff] %v1109
        %1114 = vst [vmem:[#allocation2 + $0x30] sm:$0xff] %v1110
        %1115 = vst [vmem:[#allocation2 + $0x38] sm:$0xff] %v1111
        %v1116 = vmul.f32 %v1084, %v997
        %v1117 = vmul.f32 %v1085, %v999
        %v1118 = vmul.f32 %v1086, %v1001
        %v1119 = vmul.f32 %v1087, %v1003
        %v1120 = vmul.f32 %v1088, %v1007
        %v1121 = vmul.f32 %v1089, %v1009
        %v1122 = vmul.f32 %v1090, %v1011
        %v1123 = vmul.f32 %v1091, %v1013
        %v1124 = vpack.c.bf16 %v1118, %v1116
        %v1125 = vpack.c.bf16 %v1119, %v1117
        %v1126 = vpack.c.bf16 %v1122, %v1120
        %v1127 = vpack.c.bf16 %v1123, %v1121
        %1128 = vst [vmem:[#allocation2 + $0x40] sm:$0xff] %v1124
        %1129 = vst [vmem:[#allocation2 + $0x48] sm:$0xff] %v1125
        %1130 = vst [vmem:[#allocation2 + $0x50] sm:$0xff] %v1126
        %1131 = vst [vmem:[#allocation2 + $0x58] sm:$0xff] %v1127
        %v1132 = vmul.f32 %v1084, %v1017
        %v1133 = vmul.f32 %v1085, %v1019
        %v1134 = vmul.f32 %v1086, %v1021
        %v1135 = vmul.f32 %v1087, %v1023
        %v1136 = vmul.f32 %v1088, %v1027
        %v1137 = vmul.f32 %v1089, %v1029
        %v1138 = vmul.f32 %v1090, %v1031
        %v1139 = vmul.f32 %v1091, %v1033
        %v1140 = vpack.c.bf16 %v1134, %v1132
        %v1141 = vpack.c.bf16 %v1135, %v1133
        %v1142 = vpack.c.bf16 %v1138, %v1136
        %v1143 = vpack.c.bf16 %v1139, %v1137
        %1144 = vst [vmem:[#allocation2 + $0x60] sm:$0xff] %v1140
        %1145 = vst [vmem:[#allocation2 + $0x68] sm:$0xff] %v1141
        %1146 = vst [vmem:[#allocation2 + $0x70] sm:$0xff] %v1142
        %1147 = vst [vmem:[#allocation2 + $0x78] sm:$0xff] %v1143
        %v1148 = vld [vmem:[%s5] sm:$0x3]
        %v1149 = vld [vmem:[#allocation2] sm:$0xff]
        %v1150 = vld [vmem:[#allocation2 + $0x8] sm:$0xff]
        %v1151 = vld [vmem:[#allocation2 + $0x10] sm:$0xff]
        %v1152 = vld [vmem:[#allocation2 + $0x18] sm:$0xff]
        %v1153 = vld [vmem:[#allocation2 + $0x20] sm:$0xff]
        %v1154 = vld [vmem:[#allocation2 + $0x28] sm:$0xff]
        %v1155 = vld [vmem:[#allocation2 + $0x30] sm:$0xff]
        %v1156 = vld [vmem:[#allocation2 + $0x38] sm:$0xff]
        %v1157 = vld [vmem:[#allocation2 + $0x40] sm:$0xff]
        %v1158 = vld [vmem:[#allocation2 + $0x48] sm:$0xff]
        %v1159 = vld [vmem:[#allocation2 + $0x50] sm:$0xff]
        %v1160 = vld [vmem:[#allocation2 + $0x58] sm:$0xff]
        %v1161 = vld [vmem:[#allocation2 + $0x60] sm:$0xff]
        %v1162 = vld [vmem:[#allocation2 + $0x68] sm:$0xff]
        %v1163 = vld [vmem:[#allocation2 + $0x70] sm:$0xff]
        %v1164 = vld [vmem:[#allocation2 + $0x78] sm:$0xff]
        %1165 = vmatprep.subr.bf16.mxu0 %v1150
        %1166 = vmatpush1.bf16.msra.mxu0 %v1149
        %1167 = vmatprep.subr.bf16.mxu0 %v1152
        %1168 = vmatpush1.bf16.msra.mxu0 %v1151
        %1169 = vmatprep.subr.bf16.mxu0 %v1154
        %1170 = vmatpush1.bf16.msra.mxu0 %v1153
        %1171 = vmatprep.subr.bf16.mxu0 %v1156
        %1172 = vmatpush1.bf16.msra.mxu0 %v1155
        %1173 = vmatprep.subr.bf16.mxu0 %v1158
        %1174 = vmatpush1.bf16.msra.mxu0 %v1157
        %1175 = vmatprep.subr.bf16.mxu0 %v1160
        %1176 = vmatpush1.bf16.msra.mxu0 %v1159
        %1177 = vmatprep.subr.bf16.mxu0 %v1162
        %1178 = vmatpush1.bf16.msra.mxu0 %v1161
        %1179 = vmatprep.subr.bf16.mxu0 %v1164
        %1180 = vmatpush1.bf16.msra.mxu0 %v1163
        %1181 = vmatprep.subr.bf16.mxu0 0
        %1182 = vmatpush1.bf16.msra.mxu0 0
        %1183 = vmatprep.subr.bf16.mxu0 0
        %1184 = vmatpush1.bf16.msra.mxu0 0
        %1185 = vmatprep.subr.bf16.mxu0 0
        %1186 = vmatpush1.bf16.msra.mxu0 0
        %1187 = vmatprep.subr.bf16.mxu0 0
        %1188 = vmatpush1.bf16.msra.mxu0 0
        %1189 = vmatprep.subr.bf16.mxu0 0
        %1190 = vmatpush1.bf16.msra.mxu0 0
        %1191 = vmatprep.subr.bf16.mxu0 0
        %1192 = vmatpush1.bf16.msra.mxu0 0
        %1193 = vmatprep.subr.bf16.mxu0 0
        %1194 = vmatpush1.bf16.msra.mxu0 0
        %1195 = vmatprep.subr.bf16.mxu0 0
        %1196 = vmatpush1.bf16.msra.mxu0 0
        %1197 = vmatprep.mubr.bf16.mxu0 0
        %1198 = vmatmul.mubr.bf16.gmra.mrb[0].mxu0 %v1148
        %v1199 = vpop.f32.mrb[0].mxu0
        %v1200 = vadd.f32 0.0, %v1199
        %v1201 = vpop.f32.mrb[0].mxu0
        %v1202 = vadd.f32 0.0, %v1201
        %v1203 = vpop.f32.mrb[0].mxu0
        %v1204 = vpop.f32.mrb[0].mxu0
        %1205 = vdwg.mxu0
        %v1208 = vcombine.low %v1200, %v1202
        %1210 = vst [vmem:[%s245] sm:$0x77] %v1208
        %s1211 = sand.u32 %s159, 1
        %s1212 = scalar_lea.sflag [#allocation4], %s1211
        %s1213 = sand.u32 %s159, 1
        %s1214 = smul.addr %s1213, 8
        %s1215 = scalar_lea.vmem [#allocation3], %s1214
        // Predicated region
        $region45: #{divfree_forward.1} parent=43 // pred_check
          %p1216 = pneg %p169
        $region46: #{divfree_forward.1} parent=43 // pred_check_branch
          %1218 = sbr.rel (%p1216) target = $region48
        $region47: #{divfree_forward.1} parent=43 // pred_region
          %s1219 = smul.u32 2, %s20
          %s1221 = ssub.s32 128, 128
          %1222 = vsyncadd %s1212, %s1221
          %s1223 = smul.addr %s1219, 64
          %s1224 = scalar_lea.hbm %s6, %s1223
          %s1226 = sshll.u32 %s1215, 4
          %s1227 = int_to_ptr.vmem [resolvable:$true] %s1226
          %1229 = dma.vmem_to_hbm [thread:$0]  %s1227, 128, %s1224, %s1212
        $region48: #{divfree_forward.1} parent=43 // pred_fallthru
          _
      $region44: #{divfree_forward.1} parent=5 // pred_fallthru
        _
      %p1230 = scmp.le.s32.totalorder 2, %s15
      // Predicated region
      $region49: #{divfree_forward.1} parent=5 // pred_check
        %p1231 = pneg %p1230
      $region50: #{divfree_forward.1} parent=5 // pred_check_branch
        %1233 = sbr.rel (%p1231) target = $region52
      $region51: #{divfree_forward.1} parent=5 // pred_region
        %s1234 = ssub.s32 %s15, 2
        // Predicated region
        $region53: #{divfree_forward.1} parent=51 // pred_check
          %p1235 = pneg %p175
        $region54: #{divfree_forward.1} parent=51 // pred_check_branch
          %1237 = sbr.rel (%p1235) target = $region56
        $region55: #{divfree_forward.1} parent=51 // pred_region
          %s1238 = sand.u32 %s160, 1
          %s1239 = scalar_lea.sflag [#allocation4], %s1238
          %s1240 = sand.u32 %s160, 1
          %s1241 = smul.addr %s1240, 8
          %s1242 = scalar_lea.vmem [#allocation3], %s1241
          %1243 = dma.done %s1239, 128
        $region56: #{divfree_forward.1} parent=51 // pred_fallthru
          _
      $region52: #{divfree_forward.1} parent=5 // pred_fallthru
        _
    $region6: #{divfree_forward.1} parent=1 // loop_footer
      %s19 = sadd.s32 1, %s15
    $region7: #{divfree_forward.1} parent=1 // loop_footer_branch
      %14 = sbr.rel target = $region3
    $region8: #{divfree_forward.1} parent=1 // loop_exit
      _
    %1244 = vsyncpa [#allocation4], 1
    %s1245 = scalar_lea.sflag [#allocation4], 1
    %1246 = vsyncpa %s1245, 1

</llo_original>
